<compile_context>
chip_gen: v7x
topology: tpu7x:2x2x1
jax: 0.10.0
libtpu: 0.0.40
codegen_flags: <defaults>
</compile_context>

<pallas_src>
import functools

import jax
import jax.numpy as jnp
from jax.experimental import pallas as pl
from jax.experimental.pallas import tpu as pltpu


def _round_up(v: int, m: int) -> int:
    return ((v + m - 1) // m) * m


def _gumbel_rnn_disc_kernel(
    x_ref,       # (1, Bp, In_p)  time-slice of time-major padded input (f32)
    wemb_ref,    # (In_p, Hp)     spectral-normalized embedding weight, transposed (bf16)
    bemb_ref,    # (1, Hp)        f32
    gamma_ref,   # (1, Hp)        f32 (zero in padded channels)
    beta_ref,    # (1, Hp)        f32
    wih_ref,     # (Hp, 3*Op)     GRU input weights, transposed, gates [r|z|n] each Op wide (bf16)
    bih_ref,     # (1, 3*Op)      f32
    whh_ref,     # (Op, 3*Op)     GRU hidden weights, transposed (f32)
    bhh_ref,     # (1, 3*Op)      f32
    out_ref,     # (Bp, Op)       final hidden state; also the resident h accumulator
    sum_ref,     # VMEM (1, Hp)   BN sum accumulator
    sq_ref,      # VMEM (1, Hp)   BN sum-of-squares accumulator
    scale_ref,   # VMEM (1, Hp)   folded BN scale
    bias_ref,    # VMEM (1, 3*Op) folded BN + GRU input bias
    *,
    B: int,
    T: int,
    Op: int,
):
    phase = pl.program_id(0)
    t = pl.program_id(1)

    # Embedding + LeakyReLU(0.2) for this timestep.  Recomputed in both phases (K = In_p is
    # tiny) instead of materializing the (T*B, H) activation in HBM/VMEM.
    x_t = x_ref[0].astype(jnp.bfloat16)                                      # (Bp, In_p)
    e = jnp.dot(x_t, wemb_ref[...], preferred_element_type=jnp.float32) + bemb_ref[...]
    a = jnp.maximum(e, 0.2 * e)                                              # LeakyReLU(0.2)

    # ---- phase 0: accumulate BatchNorm batch statistics over the real (non-padded) rows ----
    @pl.when(phase == 0)
    def _():
        @pl.when(t == 0)
        def _():
            sum_ref[...] = jnp.zeros_like(sum_ref)
            sq_ref[...] = jnp.zeros_like(sq_ref)

        rows = jax.lax.broadcasted_iota(jnp.int32, a.shape, 0)
        a_m = jnp.where(rows < B, a, 0.0)                                    # mask padded batch rows
        sum_ref[...] += jnp.sum(a_m, axis=0, keepdims=True)
        sq_ref[...] += jnp.sum(a_m * a_m, axis=0, keepdims=True)

    # ---- phase 1: fold BN once, then one GRU step per grid iteration ----
    @pl.when(phase == 1)
    def _():
        @pl.when(t == 0)
        def _():
            inv_n = 1.0 / float(B * T)
            mean = sum_ref[...] * inv_n
            var = jnp.maximum(sq_ref[...] * inv_n - mean * mean, 0.0)        # biased variance
            scale = gamma_ref[...] * jax.lax.rsqrt(var + 1e-5)
            shift = beta_ref[...] - mean * scale
            scale_ref[...] = scale
            # gi = (a*scale) @ W_ih + (shift @ W_ih + b_ih)  -- bias part folded once here.
            bias_ref[...] = (
                jnp.dot(shift.astype(jnp.bfloat16), wih_ref[...],
                        preferred_element_type=jnp.float32)
                + bih_ref[...]
            )
            out_ref[...] = jnp.zeros_like(out_ref)                           # h_0 = 0

        # Loop-invariant recurrent weights: loaded exactly once per grid step (single use).
        whh = whh_ref[...]
        bhh = bhh_ref[...]
        h = out_ref[...]                                                     # (Bp, Op) f32

        a_n = (a * scale_ref[...]).astype(jnp.bfloat16)
        gi = jnp.dot(a_n, wih_ref[...], preferred_element_type=jnp.float32) + bias_ref[...]
        gh = jnp.dot(h, whh, preferred_element_type=jnp.float32) + bhh

        rz = jax.nn.sigmoid(gi[:, : 2 * Op] + gh[:, : 2 * Op])               # fused r, z gates
        r = rz[:, :Op]
        z = rz[:, Op:]
        n = jnp.tanh(gi[:, 2 * Op:] + r * gh[:, 2 * Op:])
        out_ref[...] = (1.0 - z) * n + z * h


def spectral_normalize(w, u):
    """One PyTorch-style power iteration: W (out, in), u (out,)."""
    v = w.T @ u
    v = v / (jnp.linalg.norm(v) + 1e-12)
    u = w @ v
    u = u / (jnp.linalg.norm(u) + 1e-12)
    sigma = u @ (w @ v)
    return w / sigma


@jax.jit
def gumbel_rnn_discriminator(x, params):
    """x: (B, T, input_size) float32. Returns (B, output_size)."""
    B, T, In = x.shape
    H = params["w_emb"].shape[0]      # (H, In) PyTorch layout
    O = params["w_hh"].shape[1]       # (3O, O) PyTorch layout -> O

    Bp = _round_up(B, 8)              # sublane tile
    In_p = _round_up(In, 8)
    Hp = _round_up(H, 128)            # lane-dense
    Op = _round_up(O, 128)            # lane-dense per gate

    # Spectral norm on the real-sized weight, then pad / transpose everything (zero padding
    # is exact: padded channels/gates stay identically zero through the whole network).
    w_emb_sn = spectral_normalize(params["w_emb"], params["u_sn"])            # (H, In)

    def pad2(a, r, c):
        return jnp.pad(a, ((0, r - a.shape[0]), (0, c - a.shape[1])))

    def pad_gates_w(w_t, rows_p):      # w_t: (rows, 3*O), gate order [r|z|n]
        w3 = w_t.reshape(w_t.shape[0], 3, O)
        w3 = jnp.pad(w3, ((0, rows_p - w_t.shape[0]), (0, 0), (0, Op - O)))
        return w3.reshape(rows_p, 3 * Op)

    def pad_gates_b(b):
        b3 = jnp.pad(b.reshape(3, O), ((0, 0), (0, Op - O)))
        return b3.reshape(1, 3 * Op)

    wemb_p = pad2(w_emb_sn.T, In_p, Hp).astype(jnp.bfloat16)                  # (In_p, Hp)
    bemb_p = pad2(params["b_emb"].reshape(1, H), 1, Hp)
    gamma_p = pad2(params["bn_gamma"].reshape(1, H), 1, Hp)
    beta_p = pad2(params["bn_beta"].reshape(1, H), 1, Hp)
    wih_p = pad_gates_w(params["w_ih"].T, Hp).astype(jnp.bfloat16)            # (Hp, 3*Op)
    bih_p = pad_gates_b(params["b_ih"])
    whh_p = pad_gates_w(params["w_hh"].T, Op)                                 # (Op, 3*Op) f32
    bhh_p = pad_gates_b(params["b_hh"])

    # Time-major, batch padded to a full sublane tile.  (Fused by XLA with the zero-padding
    # above, so it is not an extra standalone HBM pass.)
    x_tm = jnp.transpose(x, (1, 0, 2))
    x_p = jnp.pad(x_tm, ((0, 0), (0, Bp - B), (0, In_p - In)))                # (T, Bp, In_p)

    kernel = functools.partial(_gumbel_rnn_disc_kernel, B=B, T=T, Op=Op)
    const = lambda p, t: (0, 0)

    out = pl.pallas_call(
        kernel,
        out_shape=jax.ShapeDtypeStruct((Bp, Op), jnp.float32),
        grid=(2, T),
        in_specs=[
            pl.BlockSpec((1, Bp, In_p), lambda p, t: (t, 0, 0)),   # x: one time-slice per step
            pl.BlockSpec((In_p, Hp), const),
            pl.BlockSpec((1, Hp), const),
            pl.BlockSpec((1, Hp), const),
            pl.BlockSpec((1, Hp), const),
            pl.BlockSpec((Hp, 3 * Op), const),
            pl.BlockSpec((1, 3 * Op), const),
            pl.BlockSpec((Op, 3 * Op), const),
            pl.BlockSpec((1, 3 * Op), const),
        ],
        out_specs=pl.BlockSpec((Bp, Op), const),                   # resident accumulator block
        scratch_shapes=[
            pltpu.VMEM((1, Hp), jnp.float32),        # BN sum
            pltpu.VMEM((1, Hp), jnp.float32),        # BN sum of squares
            pltpu.VMEM((1, Hp), jnp.float32),        # folded BN scale
            pltpu.VMEM((1, 3 * Op), jnp.float32),    # folded GRU input bias
        ],
        compiler_params=pltpu.CompilerParams(
            # Both axes are genuine sequential dependencies (stats -> recurrence; h_t -> h_{t+1}).
            # TODO(synk): a "parallel" batch grid axis would shard across v7x's two TensorCores,
            # but BatchNorm batch statistics couple all batch rows, so that needs a cross-core
            # stats reduction and is not done here.
            dimension_semantics=("arbitrary", "arbitrary"),
            # Explicit limit sized for v7x (32 MiB scoped / 64 MiB physical VMEM).
            vmem_limit_bytes=32 * 1024 * 1024,
        ),
    )(x_p, wemb_p, bemb_p, gamma_p, beta_p, wih_p, bih_p, whh_p, bhh_p)

    return out[:B, :O].reshape(-1, O)   # matches x.view(-1, output_size)


def _reference(x, params):
    """Pure-JAX f32 reference with identical PyTorch semantics (for a sanity check)."""
    B, T, In = x.shape
    H = params["w_emb"].shape[0]
    O = params["w_hh"].shape[1]
    w = spectral_normalize(params["w_emb"], params["u_sn"])
    e = jnp.einsum("bti,hi->bth", x, w) + params["b_emb"]
    a = jnp.where(e >= 0, e, 0.2 * e)
    flat = a.reshape(B * T, H)
    mean = flat.mean(axis=0)
    var = jnp.mean((flat - mean) ** 2, axis=0)          # biased, training mode
    a = (a - mean) * jax.lax.rsqrt(var + 1e-5) * params["bn_gamma"] + params["bn_beta"]
    h = jnp.zeros((B, O), jnp.float32)
    for t in range(T):
        gi = a[:, t, :] @ params["w_ih"].T + params["b_ih"]
        gh = h @ params["w_hh"].T + params["b_hh"]
        r = jax.nn.sigmoid(gi[:, :O] + gh[:, :O])
        z = jax.nn.sigmoid(gi[:, O:2 * O] + gh[:, O:2 * O])
        n = jnp.tanh(gi[:, 2 * O:] + r * gh[:, 2 * O:])
        h = (1.0 - z) * n + z * h
    return h


def init_params(key, input_size, hidden_size, output_size):
    ks = jax.random.split(key, 8)
    lin_bound = 1.0 / jnp.sqrt(input_size)
    gru_bound = 1.0 / jnp.sqrt(output_size)
    return {
        # nn.Linear(input_size, hidden_size)
        "w_emb": jax.random.uniform(ks[0], (hidden_size, input_size),
                                    minval=-lin_bound, maxval=lin_bound, dtype=jnp.float32),
        "b_emb": jax.random.uniform(ks[1], (hidden_size,),
                                    minval=-lin_bound, maxval=lin_bound, dtype=jnp.float32),
        # spectral_norm power-iteration vector u (shape = out_features)
        "u_sn": jax.random.normal(ks[2], (hidden_size,), dtype=jnp.float32),
        # nn.BatchNorm1d(hidden_size) default init
        "bn_gamma": jnp.ones((hidden_size,), jnp.float32),
        "bn_beta": jnp.zeros((hidden_size,), jnp.float32),
        # nn.GRU(hidden_size, output_size), gate order [r, z, n]
        "w_ih": jax.random.uniform(ks[3], (3 * output_size, hidden_size),
                                   minval=-gru_bound, maxval=gru_bound, dtype=jnp.float32),
        "w_hh": jax.random.uniform(ks[4], (3 * output_size, output_size),
                                   minval=-gru_bound, maxval=gru_bound, dtype=jnp.float32),
        "b_ih": jax.random.uniform(ks[5], (3 * output_size,),
                                   minval=-gru_bound, maxval=gru_bound, dtype=jnp.float32),
        "b_hh": jax.random.uniform(ks[6], (3 * output_size,),
                                   minval=-gru_bound, maxval=gru_bound, dtype=jnp.float32),
    }


if __name__ == "__main__":
    B, T = 2, 8
    input_size, hidden_size, output_size = 4, 32, 16

    key = jax.random.PRNGKey(0)
    k_x, k_p = jax.random.split(key)
    x = jax.random.normal(k_x, (B, T, input_size), dtype=jnp.float32)
    params = init_params(k_p, input_size, hidden_size, output_size)

    out = gumbel_rnn_discriminator(x, params)
    jax.block_until_ready(out)
    assert out.shape == (B, output_size)

    # Loose tolerance: kernel uses bf16 MXU operands (per perf review) vs this f32 reference.
    ref = _reference(x, params)
    err = float(jnp.max(jnp.abs(out - ref)))
    assert err < 1e-1, f"kernel/reference mismatch: max abs err = {err}"
    print("KERNEL_OK")
</pallas_src>

<mosaic_0001>
module attributes {stable_mosaic.version = 11 : i64} {
  func.func @_gumbel_rnn_disc_kernel(%arg0: i32, %arg1: i32, %arg2: memref<1x8x8xf32, #tpu.memory_space<vmem>>, %arg3: memref<8x128xbf16, #tpu.memory_space<vmem>>, %arg4: memref<1x128xf32, #tpu.memory_space<vmem>>, %arg5: memref<1x128xf32, #tpu.memory_space<vmem>>, %arg6: memref<1x128xf32, #tpu.memory_space<vmem>>, %arg7: memref<128x384xbf16, #tpu.memory_space<vmem>>, %arg8: memref<1x384xf32, #tpu.memory_space<vmem>>, %arg9: memref<128x384xf32, #tpu.memory_space<vmem>>, %arg10: memref<1x384xf32, #tpu.memory_space<vmem>>, %arg11: memref<8x128xf32, #tpu.memory_space<vmem>>, %arg12: memref<1x128xf32, #tpu.memory_space<vmem>>, %arg13: memref<1x128xf32, #tpu.memory_space<vmem>>, %arg14: memref<1x128xf32, #tpu.memory_space<vmem>>, %arg15: memref<1x384xf32, #tpu.memory_space<vmem>>) attributes {dimension_semantics = [#tpu.dimension_semantics<arbitrary>, #tpu.dimension_semantics<arbitrary>], iteration_bounds = array<i64: 2, 8>, scalar_prefetch = 0 : i64, scratch_operands = 4 : i64, tpu.core_type = #tpu.core_type<tc>, window_params = [{transform_indices = @transform_0, window_bounds = array<i64: 1, 8, 8>}, {pipeline_mode = #tpu.pipeline_mode<synchronous>, transform_indices = @transform_1, window_bounds = array<i64: 8, 128>}, {pipeline_mode = #tpu.pipeline_mode<synchronous>, transform_indices = @transform_2, window_bounds = array<i64: 1, 128>}, {pipeline_mode = #tpu.pipeline_mode<synchronous>, transform_indices = @transform_3, window_bounds = array<i64: 1, 128>}, {pipeline_mode = #tpu.pipeline_mode<synchronous>, transform_indices = @transform_4, window_bounds = array<i64: 1, 128>}, {pipeline_mode = #tpu.pipeline_mode<synchronous>, transform_indices = @transform_5, window_bounds = array<i64: 128, 384>}, {pipeline_mode = #tpu.pipeline_mode<synchronous>, transform_indices = @transform_6, window_bounds = array<i64: 1, 384>}, {pipeline_mode = #tpu.pipeline_mode<synchronous>, transform_indices = @transform_7, window_bounds = array<i64: 128, 384>}, {pipeline_mode = #tpu.pipeline_mode<synchronous>, transform_indices = @transform_8, window_bounds = array<i64: 1, 384>}, {pipeline_mode = #tpu.pipeline_mode<synchronous>, transform_indices = @transform_9, window_bounds = array<i64: 8, 128>}]} {
    %c0 = arith.constant 0 : index
    %c0_0 = arith.constant 0 : index
    %c0_1 = arith.constant 0 : index
    %0 = vector.load %arg2[%c0, %c0_0, %c0_1] : memref<1x8x8xf32, #tpu.memory_space<vmem>>, vector<1x8x8xf32>
    %1 = vector.shape_cast %0 : vector<1x8x8xf32> to vector<8x8xf32>
    %2 = arith.truncf %1 : vector<8x8xf32> to vector<8x8xbf16>
    %c0_2 = arith.constant 0 : index
    %c0_3 = arith.constant 0 : index
    %3 = vector.load %arg3[%c0_2, %c0_3] : memref<8x128xbf16, #tpu.memory_space<vmem>>, vector<8x128xbf16>
    %cst = arith.constant dense<0.000000e+00> : vector<8x128xf32>
    %4 = tpu.matmul %2, %3, %cst {dimension_numbers = #tpu.dot_dimension_numbers<[1], [0], [0], [1], [0, 0, 1, 1], [], []>} : vector<8x8xbf16>, vector<8x128xbf16>, vector<8x128xf32> -> vector<8x128xf32>
    %c0_4 = arith.constant 0 : index
    %c0_5 = arith.constant 0 : index
    %5 = vector.load %arg4[%c0_4, %c0_5] : memref<1x128xf32, #tpu.memory_space<vmem>>, vector<1x128xf32>
    %6 = vector.broadcast %5 : vector<1x128xf32> to vector<8x128xf32>
    %7 = arith.addf %4, %6 : vector<8x128xf32>
    %cst_6 = arith.constant 2.000000e-01 : f32
    %8 = vector.broadcast %cst_6 : f32 to vector<8x128xf32>
    %9 = arith.mulf %8, %7 : vector<8x128xf32>
    %10 = arith.maximumf %7, %9 : vector<8x128xf32>
    %c0_i32 = arith.constant 0 : i32
    %11 = arith.cmpi eq, %arg0, %c0_i32 : i32
    %12 = arith.extui %11 : i1 to i32
    %c0_i32_7 = arith.constant 0 : i32
    %13 = arith.cmpi ne, %12, %c0_i32_7 : i32
    scf.if %13 {
      %c0_i32_9 = arith.constant 0 : i32
      %17 = arith.cmpi eq, %arg1, %c0_i32_9 : i32
      %18 = arith.extui %17 : i1 to i32
      %c0_i32_10 = arith.constant 0 : i32
      %19 = arith.cmpi ne, %18, %c0_i32_10 : i32
      scf.if %19 {
        %cst_22 = arith.constant 0.000000e+00 : f32
        %36 = vector.broadcast %cst_22 : f32 to vector<1x128xf32>
        %c0_23 = arith.constant 0 : index
        %c0_24 = arith.constant 0 : index
        %37 = vector.load %arg12[%c0_23, %c0_24] : memref<1x128xf32, #tpu.memory_space<vmem>>, vector<1x128xf32>
        tpu.vector_store %arg12[%c0_23, %c0_24], %36 {strides = array<i32>} : memref<1x128xf32, #tpu.memory_space<vmem>>, vector<1x128xf32>,
        %cst_25 = arith.constant 0.000000e+00 : f32
        %38 = vector.broadcast %cst_25 : f32 to vector<1x128xf32>
        %c0_26 = arith.constant 0 : index
        %c0_27 = arith.constant 0 : index
        %39 = vector.load %arg13[%c0_26, %c0_27] : memref<1x128xf32, #tpu.memory_space<vmem>>, vector<1x128xf32>
        tpu.vector_store %arg13[%c0_26, %c0_27], %38 {strides = array<i32>} : memref<1x128xf32, #tpu.memory_space<vmem>>, vector<1x128xf32>,
      } else {
      }
      %20 = tpu.iota {dimensions = array<i32: 0>} : vector<8x128xi32>
      %c2_i32 = arith.constant 2 : i32
      %21 = vector.broadcast %c2_i32 : i32 to vector<8x128xi32>
      %22 = arith.cmpi slt, %20, %21 : vector<8x128xi32>
      %cst_11 = arith.constant 0.000000e+00 : f32
      %23 = vector.broadcast %cst_11 : f32 to vector<8x128xf32>
      %24 = arith.select %22, %10, %23 : vector<8x128xi1>, vector<8x128xf32>
      %c0_12 = arith.constant 0 : index
      %c0_13 = arith.constant 0 : index
      %25 = vector.load %arg12[%c0_12, %c0_13] : memref<1x128xf32, #tpu.memory_space<vmem>>, vector<1x128xf32>
      %cst_14 = arith.constant dense<0.000000e+00> : vector<128xf32>
      %26 = vector.multi_reduction <add>, %24, %cst_14 [0] : vector<8x128xf32> to vector<128xf32>
      %27 = vector.shape_cast %26 : vector<128xf32> to vector<1x128xf32>
      %28 = arith.addf %25, %27 : vector<1x128xf32>
      %c0_15 = arith.constant 0 : index
      %c0_16 = arith.constant 0 : index
      %29 = vector.load %arg12[%c0_15, %c0_16] : memref<1x128xf32, #tpu.memory_space<vmem>>, vector<1x128xf32>
      tpu.vector_store %arg12[%c0_15, %c0_16], %28 {strides = array<i32>} : memref<1x128xf32, #tpu.memory_space<vmem>>, vector<1x128xf32>,
      %c0_17 = arith.constant 0 : index
      %c0_18 = arith.constant 0 : index
      %30 = vector.load %arg13[%c0_17, %c0_18] : memref<1x128xf32, #tpu.memory_space<vmem>>, vector<1x128xf32>
      %31 = arith.mulf %24, %24 : vector<8x128xf32>
      %cst_19 = arith.constant dense<0.000000e+00> : vector<128xf32>
      %32 = vector.multi_reduction <add>, %31, %cst_19 [0] : vector<8x128xf32> to vector<128xf32>
      %33 = vector.shape_cast %32 : vector<128xf32> to vector<1x128xf32>
      %34 = arith.addf %30, %33 : vector<1x128xf32>
      %c0_20 = arith.constant 0 : index
      %c0_21 = arith.constant 0 : index
      %35 = vector.load %arg13[%c0_20, %c0_21] : memref<1x128xf32, #tpu.memory_space<vmem>>, vector<1x128xf32>
      tpu.vector_store %arg13[%c0_20, %c0_21], %34 {strides = array<i32>} : memref<1x128xf32, #tpu.memory_space<vmem>>, vector<1x128xf32>,
    } else {
    }
    %c1_i32 = arith.constant 1 : i32
    %14 = arith.cmpi eq, %arg0, %c1_i32 : i32
    %15 = arith.extui %14 : i1 to i32
    %c0_i32_8 = arith.constant 0 : i32
    %16 = arith.cmpi ne, %15, %c0_i32_8 : i32
    scf.if %16 {
      %c0_i32_9 = arith.constant 0 : i32
      %17 = arith.cmpi eq, %arg1, %c0_i32_9 : i32
      %18 = arith.extui %17 : i1 to i32
      %c0_i32_10 = arith.constant 0 : i32
      %19 = arith.cmpi ne, %18, %c0_i32_10 : i32
      scf.if %19 {
        %c0_29 = arith.constant 0 : index
        %c0_30 = arith.constant 0 : index
        %56 = vector.load %arg12[%c0_29, %c0_30] : memref<1x128xf32, #tpu.memory_space<vmem>>, vector<1x128xf32>
        %cst_31 = arith.constant 6.250000e-02 : f32
        %57 = vector.broadcast %cst_31 : f32 to vector<1x128xf32>
        %58 = arith.mulf %56, %57 : vector<1x128xf32>
        %c0_32 = arith.constant 0 : index
        %c0_33 = arith.constant 0 : index
        %59 = vector.load %arg13[%c0_32, %c0_33] : memref<1x128xf32, #tpu.memory_space<vmem>>, vector<1x128xf32>
        %cst_34 = arith.constant 6.250000e-02 : f32
        %60 = vector.broadcast %cst_34 : f32 to vector<1x128xf32>
        %61 = arith.mulf %59, %60 : vector<1x128xf32>
        %62 = arith.mulf %58, %58 : vector<1x128xf32>
        %63 = arith.subf %61, %62 : vector<1x128xf32>
        %cst_35 = arith.constant 0.000000e+00 : f32
        %64 = vector.broadcast %cst_35 : f32 to vector<1x128xf32>
        %65 = arith.maximumf %63, %64 : vector<1x128xf32>
        %c0_36 = arith.constant 0 : index
        %c0_37 = arith.constant 0 : index
        %66 = vector.load %arg5[%c0_36, %c0_37] : memref<1x128xf32, #tpu.memory_space<vmem>>, vector<1x128xf32>
        %cst_38 = arith.constant 9.99999974E-6 : f32
        %67 = vector.broadcast %cst_38 : f32 to vector<1x128xf32>
        %68 = arith.addf %65, %67 : vector<1x128xf32>
        %69 = math.rsqrt %68 : vector<1x128xf32>
        %70 = arith.mulf %66, %69 : vector<1x128xf32>
        %c0_39 = arith.constant 0 : index
        %c0_40 = arith.constant 0 : index
        %71 = vector.load %arg6[%c0_39, %c0_40] : memref<1x128xf32, #tpu.memory_space<vmem>>, vector<1x128xf32>
        %72 = arith.mulf %58, %70 : vector<1x128xf32>
        %73 = arith.subf %71, %72 : vector<1x128xf32>
        %c0_41 = arith.constant 0 : index
        %c0_42 = arith.constant 0 : index
        %74 = vector.load %arg14[%c0_41, %c0_42] : memref<1x128xf32, #tpu.memory_space<vmem>>, vector<1x128xf32>
        tpu.vector_store %arg14[%c0_41, %c0_42], %70 {strides = array<i32>} : memref<1x128xf32, #tpu.memory_space<vmem>>, vector<1x128xf32>,
        %75 = arith.truncf %73 : vector<1x128xf32> to vector<1x128xbf16>
        %c0_43 = arith.constant 0 : index
        %c0_44 = arith.constant 0 : index
        %76 = vector.load %arg7[%c0_43, %c0_44] : memref<128x384xbf16, #tpu.memory_space<vmem>>, vector<128x384xbf16>
        %cst_45 = arith.constant dense<0.000000e+00> : vector<1x384xf32>
        %77 = tpu.matmul %75, %76, %cst_45 {dimension_numbers = #tpu.dot_dimension_numbers<[1], [0], [0], [1], [0, 0, 1, 1], [], []>} : vector<1x128xbf16>, vector<128x384xbf16>, vector<1x384xf32> -> vector<1x384xf32>
        %c0_46 = arith.constant 0 : index
        %c0_47 = arith.constant 0 : index
        %78 = vector.load %arg8[%c0_46, %c0_47] : memref<1x384xf32, #tpu.memory_space<vmem>>, vector<1x384xf32>
        %79 = arith.addf %77, %78 : vector<1x384xf32>
        %c0_48 = arith.constant 0 : index
        %c0_49 = arith.constant 0 : index
        %80 = vector.load %arg15[%c0_48, %c0_49] : memref<1x384xf32, #tpu.memory_space<vmem>>, vector<1x384xf32>
        tpu.vector_store %arg15[%c0_48, %c0_49], %79 {strides = array<i32>} : memref<1x384xf32, #tpu.memory_space<vmem>>, vector<1x384xf32>,
        %cst_50 = arith.constant 0.000000e+00 : f32
        %81 = vector.broadcast %cst_50 : f32 to vector<8x128xf32>
        %c0_51 = arith.constant 0 : index
        %c0_52 = arith.constant 0 : index
        %82 = vector.load %arg11[%c0_51, %c0_52] : memref<8x128xf32, #tpu.memory_space<vmem>>, vector<8x128xf32>
        tpu.vector_store %arg11[%c0_51, %c0_52], %81 {strides = array<i32>} : memref<8x128xf32, #tpu.memory_space<vmem>>, vector<8x128xf32>,
      } else {
      }
      %c0_11 = arith.constant 0 : index
      %c0_12 = arith.constant 0 : index
      %20 = vector.load %arg9[%c0_11, %c0_12] : memref<128x384xf32, #tpu.memory_space<vmem>>, vector<128x384xf32>
      %c0_13 = arith.constant 0 : index
      %c0_14 = arith.constant 0 : index
      %21 = vector.load %arg10[%c0_13, %c0_14] : memref<1x384xf32, #tpu.memory_space<vmem>>, vector<1x384xf32>
      %c0_15 = arith.constant 0 : index
      %c0_16 = arith.constant 0 : index
      %22 = vector.load %arg11[%c0_15, %c0_16] : memref<8x128xf32, #tpu.memory_space<vmem>>, vector<8x128xf32>
      %c0_17 = arith.constant 0 : index
      %c0_18 = arith.constant 0 : index
      %23 = vector.load %arg14[%c0_17, %c0_18] : memref<1x128xf32, #tpu.memory_space<vmem>>, vector<1x128xf32>
      %24 = vector.broadcast %23 : vector<1x128xf32> to vector<8x128xf32>
      %25 = arith.mulf %10, %24 : vector<8x128xf32>
      %26 = arith.truncf %25 : vector<8x128xf32> to vector<8x128xbf16>
      %c0_19 = arith.constant 0 : index
      %c0_20 = arith.constant 0 : index
      %27 = vector.load %arg7[%c0_19, %c0_20] : memref<128x384xbf16, #tpu.memory_space<vmem>>, vector<128x384xbf16>
      %cst_21 = arith.constant dense<0.000000e+00> : vector<8x384xf32>
      %28 = tpu.matmul %26, %27, %cst_21 {dimension_numbers = #tpu.dot_dimension_numbers<[1], [0], [0], [1], [0, 0, 1, 1], [], []>} : vector<8x128xbf16>, vector<128x384xbf16>, vector<8x384xf32> -> vector<8x384xf32>
      %c0_22 = arith.constant 0 : index
      %c0_23 = arith.constant 0 : index
      %29 = vector.load %arg15[%c0_22, %c0_23] : memref<1x384xf32, #tpu.memory_space<vmem>>, vector<1x384xf32>
      %30 = vector.broadcast %29 : vector<1x384xf32> to vector<8x384xf32>
      %31 = arith.addf %28, %30 : vector<8x384xf32>
      %cst_24 = arith.constant dense<0.000000e+00> : vector<8x384xf32>
      %32 = tpu.matmul %22, %20, %cst_24 {dimension_numbers = #tpu.dot_dimension_numbers<[1], [0], [0], [1], [0, 0, 1, 1], [], []>} : vector<8x128xf32>, vector<128x384xf32>, vector<8x384xf32> -> vector<8x384xf32>
      %33 = vector.broadcast %21 : vector<1x384xf32> to vector<8x384xf32>
      %34 = arith.addf %32, %33 : vector<8x384xf32>
      %35 = vector.extract_strided_slice %31 {offsets = [0, 0], sizes = [8, 256], strides = [1, 1]} : vector<8x384xf32> to vector<8x256xf32>
      %36 = vector.extract_strided_slice %34 {offsets = [0, 0], sizes = [8, 256], strides = [1, 1]} : vector<8x384xf32> to vector<8x256xf32>
      %37 = arith.addf %35, %36 : vector<8x256xf32>
      %38 = arith.negf %37 : vector<8x256xf32>
      %39 = math.exp %38 : vector<8x256xf32>
      %cst_25 = arith.constant 1.000000e+00 : f32
      %40 = vector.broadcast %cst_25 : f32 to vector<8x256xf32>
      %41 = arith.addf %40, %39 : vector<8x256xf32>
      %42 = arith.divf %40, %41 : vector<8x256xf32>
      %43 = vector.extract_strided_slice %42 {offsets = [0, 0], sizes = [8, 128], strides = [1, 1]} : vector<8x256xf32> to vector<8x128xf32>
      %44 = vector.extract_strided_slice %42 {offsets = [0, 128], sizes = [8, 128], strides = [1, 1]} : vector<8x256xf32> to vector<8x128xf32>
      %45 = vector.extract_strided_slice %31 {offsets = [0, 256], sizes = [8, 128], strides = [1, 1]} : vector<8x384xf32> to vector<8x128xf32>
      %46 = vector.extract_strided_slice %34 {offsets = [0, 256], sizes = [8, 128], strides = [1, 1]} : vector<8x384xf32> to vector<8x128xf32>
      %47 = arith.mulf %43, %46 : vector<8x128xf32>
      %48 = arith.addf %45, %47 : vector<8x128xf32>
      %49 = math.tanh %48 : vector<8x128xf32>
      %cst_26 = arith.constant 1.000000e+00 : f32
      %50 = vector.broadcast %cst_26 : f32 to vector<8x128xf32>
      %51 = arith.subf %50, %44 : vector<8x128xf32>
      %52 = arith.mulf %51, %49 : vector<8x128xf32>
      %53 = arith.mulf %44, %22 : vector<8x128xf32>
      %54 = arith.addf %52, %53 : vector<8x128xf32>
      %c0_27 = arith.constant 0 : index
      %c0_28 = arith.constant 0 : index
      %55 = vector.load %arg11[%c0_27, %c0_28] : memref<8x128xf32, #tpu.memory_space<vmem>>, vector<8x128xf32>
      tpu.vector_store %arg11[%c0_27, %c0_28], %54 {strides = array<i32>} : memref<8x128xf32, #tpu.memory_space<vmem>>, vector<8x128xf32>,
    } else {
    }
    return
  }
  func.func @transform_0(%arg0: i32, %arg1: i32) -> (i32, i32, i32) {
    %c0_i32 = arith.constant 0 : i32
    %c0_i32_0 = arith.constant 0 : i32
    %c0_i32_1 = arith.constant 0 : i32
    return %arg1, %c0_i32, %c0_i32_0 : i32, i32, i32
  }
  func.func @transform_1(%arg0: i32, %arg1: i32) -> (i32, i32) {
    %c0_i32 = arith.constant 0 : i32
    %c0_i32_0 = arith.constant 0 : i32
    %c0_i32_1 = arith.constant 0 : i32
    return %c0_i32, %c0_i32_0 : i32, i32
  }
  func.func @transform_2(%arg0: i32, %arg1: i32) -> (i32, i32) {
    %c0_i32 = arith.constant 0 : i32
    %c0_i32_0 = arith.constant 0 : i32
    %c0_i32_1 = arith.constant 0 : i32
    return %c0_i32, %c0_i32_0 : i32, i32
  }
  func.func @transform_3(%arg0: i32, %arg1: i32) -> (i32, i32) {
    %c0_i32 = arith.constant 0 : i32
    %c0_i32_0 = arith.constant 0 : i32
    %c0_i32_1 = arith.constant 0 : i32
    return %c0_i32, %c0_i32_0 : i32, i32
  }
  func.func @transform_4(%arg0: i32, %arg1: i32) -> (i32, i32) {
    %c0_i32 = arith.constant 0 : i32
    %c0_i32_0 = arith.constant 0 : i32
    %c0_i32_1 = arith.constant 0 : i32
    return %c0_i32, %c0_i32_0 : i32, i32
  }
  func.func @transform_5(%arg0: i32, %arg1: i32) -> (i32, i32) {
    %c0_i32 = arith.constant 0 : i32
    %c0_i32_0 = arith.constant 0 : i32
    %c0_i32_1 = arith.constant 0 : i32
    return %c0_i32, %c0_i32_0 : i32, i32
  }
  func.func @transform_6(%arg0: i32, %arg1: i32) -> (i32, i32) {
    %c0_i32 = arith.constant 0 : i32
    %c0_i32_0 = arith.constant 0 : i32
    %c0_i32_1 = arith.constant 0 : i32
    return %c0_i32, %c0_i32_0 : i32, i32
  }
  func.func @transform_7(%arg0: i32, %arg1: i32) -> (i32, i32) {
    %c0_i32 = arith.constant 0 : i32
    %c0_i32_0 = arith.constant 0 : i32
    %c0_i32_1 = arith.constant 0 : i32
    return %c0_i32, %c0_i32_0 : i32, i32
  }
  func.func @transform_8(%arg0: i32, %arg1: i32) -> (i32, i32) {
    %c0_i32 = arith.constant 0 : i32
    %c0_i32_0 = arith.constant 0 : i32
    %c0_i32_1 = arith.constant 0 : i32
    return %c0_i32, %c0_i32_0 : i32, i32
  }
  func.func @transform_9(%arg0: i32, %arg1: i32) -> (i32, i32) {
    %c0_i32 = arith.constant 0 : i32
    %c0_i32_0 = arith.constant 0 : i32
    %c0_i32_1 = arith.constant 0 : i32
    return %c0_i32, %c0_i32_0 : i32, i32
  }
}

</mosaic_0001>

<llo_original>
// kernel: gumbel_rnn_discriminator.1
$region0: #{gumbel_rnn_discriminator.1}
  #allocation0 [shape = 'u32[]', space=smem, size = 0x4, offset = 0x4, fixed_abs, tag = 'smem constant byte address 0x4 - core index']
  #allocation1 [shape = 'u32[144,128]{1,0:T(1,128)}', space=vmem, size = 0x12000, scoped, tag = 'internal scratch']
  #allocation2 [shape = 'f32[1,128]{1,0:T(1,128)}', space=vmem, size = 0x200, scoped, tag = 'scratch operand']
  #allocation3 [shape = 'f32[1,128]{1,0:T(1,128)}', space=vmem, size = 0x200, scoped, tag = 'scratch operand']
  #allocation4 [shape = 'f32[1,128]{1,0:T(1,128)}', space=vmem, size = 0x200, scoped, tag = 'scratch operand']
  #allocation5 [shape = 'f32[1,384]{1,0:T(1,128)}', space=vmem, size = 0x600, scoped, tag = 'scratch operand']
  %s0 = inlined_call_operand.vmem [shape: f32[8,8,8], index: 0, kind: input, shape index: {}]
  %s1 = inlined_call_operand.vmem [shape: bf16[8,128], index: 1, kind: input, shape index: {}]
  %s2 = inlined_call_operand.vmem [shape: f32[1,128], index: 2, kind: input, shape index: {}]
  %s3 = inlined_call_operand.vmem [shape: f32[1,128], index: 3, kind: input, shape index: {}]
  %s4 = inlined_call_operand.vmem [shape: f32[1,128], index: 4, kind: input, shape index: {}]
  %s5 = inlined_call_operand.vmem [shape: bf16[128,384], index: 5, kind: input, shape index: {}]
  %s6 = inlined_call_operand.vmem [shape: f32[1,384], index: 6, kind: input, shape index: {}]
  %s7 = inlined_call_operand.vmem [shape: f32[128,384], index: 7, kind: input, shape index: {}]
  %s8 = inlined_call_operand.vmem [shape: f32[1,384], index: 8, kind: input, shape index: {}]
  %s9 = inlined_call_operand.vmem [shape: f32[8,128], index: 9, kind: output, shape index: {}]
  %s10 = sld [smem:[#allocation0]]
  $region85: #{gumbel_rnn_discriminator.1} parent=0
    _
  %s12 = ssub.s32 1, %s10
  %s13 = scalar_select 0, %s12, %s10
  loop: start=0, step=1, limit=18
  $region2: #{gumbel_rnn_discriminator.1} parent=0 // loop_pre_header
    _
  $region3: #{gumbel_rnn_discriminator.1} parent=0 // loop_header
    %s15 = sphi 0, %s19
    %p16 = scmp.ge.s32.totalorder %s15, 18
    %s22 = sphi 0, %s34
    %s23 = sphi 0, %s30
    %s24 = sphi 0, %s22
    %s25 = sphi 0, %s23
    %s26 = sphi 0, %s24
    %s27 = sphi 0, %s25
    %s37 = sphi 0, %s39
    %s40 = sphi 0, %s37
    %s41 = sphi 0, %s40
    %s57 = sphi 0, %s41
    %s61 = sphi 0, %s61
    %s63 = sphi 0, %s61
    %s64 = sphi 0, %s63
    %s78 = sphi 0, %s64
    %s82 = sphi 0, %s82
    %s84 = sphi 0, %s82
    %s85 = sphi 0, %s84
    %s99 = sphi 0, %s85
    %s103 = sphi 0, %s103
    %s105 = sphi 0, %s103
    %s106 = sphi 0, %s105
    %s120 = sphi 0, %s106
    %s124 = sphi 0, %s124
    %s126 = sphi 0, %s124
    %s127 = sphi 0, %s126
    %s141 = sphi 0, %s127
    %s145 = sphi 0, %s145
    %s147 = sphi 0, %s145
    %s148 = sphi 0, %s147
    %s162 = sphi 0, %s148
    %s166 = sphi 0, %s166
    %s168 = sphi 0, %s166
    %s169 = sphi 0, %s168
    %s183 = sphi 0, %s169
    %s187 = sphi 0, %s187
    %s189 = sphi 0, %s187
    %s190 = sphi 0, %s189
    %s204 = sphi 0, %s190
    %s208 = sphi 0, %s208
    %s210 = sphi 0, %s208
    %s211 = sphi 0, %s210
    %s225 = sphi 0, %s211
    %s229 = sphi 0, %s229
    %s231 = sphi 0, %s229
    %s232 = sphi 0, %s231
    %s246 = sphi 0, %s232
  $region4: #{gumbel_rnn_discriminator.1} parent=0 // loop_header_branch
    %18 = sbr.rel (%p16) target = $region8
  $region5: #{gumbel_rnn_discriminator.1} parent=0 // loop_body
    %s20 = ssub.s32 %s15, 1
    %s21 = ssub.s32 %s15, 2
    %s28 = sadd.s32 1, %s23
    %p29 = scmp.ge.s32.totalorder %s28, 8
    %s30 = scalar_select %p29, 0, %s28
    %s31 = sadd.s32 1, %s22
    %s32 = scalar_select %p29, %s31, %s22
    %p33 = scmp.ge.s32.totalorder %s32, 2
    %s34 = scalar_select %p33, 0, %s32
    %s35 = ssub.s32 %s23, %s30
    %p36 = scmp.eq.s32.totalorder %s35, 0
    %s38 = sadd.s32 %s37, 1
    %s39 = scalar_select %p36, %s37, %s38
    %p42 = pneg %p36
    %p43 = scmp.eq.s32.totalorder %s15, 15
    %p44 = por %p42, %p43
    %p45 = scmp.ne.s32.totalorder %s37, %s40
    %p46 = scmp.eq.s32.totalorder %s15, 0
    %p47 = por %p45, %p46
    %p48 = scmp.ne.s32.totalorder %s37, %s40
    %p49 = scmp.eq.s32.totalorder %s20, 15
    %p50 = por %p48, %p49
    %p51 = scmp.ne.s32.totalorder %s40, %s41
    %p52 = scmp.eq.s32.totalorder %s20, 0
    %p53 = por %p51, %p52
    %p54 = scmp.ne.s32.totalorder %s40, %s41
    %p55 = scmp.eq.s32.totalorder %s21, 15
    %p56 = por %p54, %p55
    %p58 = scmp.ne.s32.totalorder %s41, %s57
    %p59 = scmp.eq.s32.totalorder %s21, 0
    %p60 = por %p58, %p59
    %s62 = sadd.s32 %s61, 1
    %p65 = scmp.eq.s32.totalorder %s15, 15
    %p66 = scmp.ne.s32.totalorder %s61, %s63
    %p67 = scmp.eq.s32.totalorder %s15, 0
    %p68 = por %p66, %p67
    %p69 = scmp.ne.s32.totalorder %s61, %s63
    %p70 = scmp.eq.s32.totalorder %s20, 15
    %p71 = por %p69, %p70
    %p72 = scmp.ne.s32.totalorder %s63, %s64
    %p73 = scmp.eq.s32.totalorder %s20, 0
    %p74 = por %p72, %p73
    %p75 = scmp.ne.s32.totalorder %s63, %s64
    %p76 = scmp.eq.s32.totalorder %s21, 15
    %p77 = por %p75, %p76
    %p79 = scmp.ne.s32.totalorder %s64, %s78
    %p80 = scmp.eq.s32.totalorder %s21, 0
    %p81 = por %p79, %p80
    %s83 = sadd.s32 %s82, 1
    %p86 = scmp.eq.s32.totalorder %s15, 15
    %p87 = scmp.ne.s32.totalorder %s82, %s84
    %p88 = scmp.eq.s32.totalorder %s15, 0
    %p89 = por %p87, %p88
    %p90 = scmp.ne.s32.totalorder %s82, %s84
    %p91 = scmp.eq.s32.totalorder %s20, 15
    %p92 = por %p90, %p91
    %p93 = scmp.ne.s32.totalorder %s84, %s85
    %p94 = scmp.eq.s32.totalorder %s20, 0
    %p95 = por %p93, %p94
    %p96 = scmp.ne.s32.totalorder %s84, %s85
    %p97 = scmp.eq.s32.totalorder %s21, 15
    %p98 = por %p96, %p97
    %p100 = scmp.ne.s32.totalorder %s85, %s99
    %p101 = scmp.eq.s32.totalorder %s21, 0
    %p102 = por %p100, %p101
    %s104 = sadd.s32 %s103, 1
    %p107 = scmp.eq.s32.totalorder %s15, 15
    %p108 = scmp.ne.s32.totalorder %s103, %s105
    %p109 = scmp.eq.s32.totalorder %s15, 0
    %p110 = por %p108, %p109
    %p111 = scmp.ne.s32.totalorder %s103, %s105
    %p112 = scmp.eq.s32.totalorder %s20, 15
    %p113 = por %p111, %p112
    %p114 = scmp.ne.s32.totalorder %s105, %s106
    %p115 = scmp.eq.s32.totalorder %s20, 0
    %p116 = por %p114, %p115
    %p117 = scmp.ne.s32.totalorder %s105, %s106
    %p118 = scmp.eq.s32.totalorder %s21, 15
    %p119 = por %p117, %p118
    %p121 = scmp.ne.s32.totalorder %s106, %s120
    %p122 = scmp.eq.s32.totalorder %s21, 0
    %p123 = por %p121, %p122
    %s125 = sadd.s32 %s124, 1
    %p128 = scmp.eq.s32.totalorder %s15, 15
    %p129 = scmp.ne.s32.totalorder %s124, %s126
    %p130 = scmp.eq.s32.totalorder %s15, 0
    %p131 = por %p129, %p130
    %p132 = scmp.ne.s32.totalorder %s124, %s126
    %p133 = scmp.eq.s32.totalorder %s20, 15
    %p134 = por %p132, %p133
    %p135 = scmp.ne.s32.totalorder %s126, %s127
    %p136 = scmp.eq.s32.totalorder %s20, 0
    %p137 = por %p135, %p136
    %p138 = scmp.ne.s32.totalorder %s126, %s127
    %p139 = scmp.eq.s32.totalorder %s21, 15
    %p140 = por %p138, %p139
    %p142 = scmp.ne.s32.totalorder %s127, %s141
    %p143 = scmp.eq.s32.totalorder %s21, 0
    %p144 = por %p142, %p143
    %s146 = sadd.s32 %s145, 1
    %p149 = scmp.eq.s32.totalorder %s15, 15
    %p150 = scmp.ne.s32.totalorder %s145, %s147
    %p151 = scmp.eq.s32.totalorder %s15, 0
    %p152 = por %p150, %p151
    %p153 = scmp.ne.s32.totalorder %s145, %s147
    %p154 = scmp.eq.s32.totalorder %s20, 15
    %p155 = por %p153, %p154
    %p156 = scmp.ne.s32.totalorder %s147, %s148
    %p157 = scmp.eq.s32.totalorder %s20, 0
    %p158 = por %p156, %p157
    %p159 = scmp.ne.s32.totalorder %s147, %s148
    %p160 = scmp.eq.s32.totalorder %s21, 15
    %p161 = por %p159, %p160
    %p163 = scmp.ne.s32.totalorder %s148, %s162
    %p164 = scmp.eq.s32.totalorder %s21, 0
    %p165 = por %p163, %p164
    %s167 = sadd.s32 %s166, 1
    %p170 = scmp.eq.s32.totalorder %s15, 15
    %p171 = scmp.ne.s32.totalorder %s166, %s168
    %p172 = scmp.eq.s32.totalorder %s15, 0
    %p173 = por %p171, %p172
    %p174 = scmp.ne.s32.totalorder %s166, %s168
    %p175 = scmp.eq.s32.totalorder %s20, 15
    %p176 = por %p174, %p175
    %p177 = scmp.ne.s32.totalorder %s168, %s169
    %p178 = scmp.eq.s32.totalorder %s20, 0
    %p179 = por %p177, %p178
    %p180 = scmp.ne.s32.totalorder %s168, %s169
    %p181 = scmp.eq.s32.totalorder %s21, 15
    %p182 = por %p180, %p181
    %p184 = scmp.ne.s32.totalorder %s169, %s183
    %p185 = scmp.eq.s32.totalorder %s21, 0
    %p186 = por %p184, %p185
    %s188 = sadd.s32 %s187, 1
    %p191 = scmp.eq.s32.totalorder %s15, 15
    %p192 = scmp.ne.s32.totalorder %s187, %s189
    %p193 = scmp.eq.s32.totalorder %s15, 0
    %p194 = por %p192, %p193
    %p195 = scmp.ne.s32.totalorder %s187, %s189
    %p196 = scmp.eq.s32.totalorder %s20, 15
    %p197 = por %p195, %p196
    %p198 = scmp.ne.s32.totalorder %s189, %s190
    %p199 = scmp.eq.s32.totalorder %s20, 0
    %p200 = por %p198, %p199
    %p201 = scmp.ne.s32.totalorder %s189, %s190
    %p202 = scmp.eq.s32.totalorder %s21, 15
    %p203 = por %p201, %p202
    %p205 = scmp.ne.s32.totalorder %s190, %s204
    %p206 = scmp.eq.s32.totalorder %s21, 0
    %p207 = por %p205, %p206
    %s209 = sadd.s32 %s208, 1
    %p212 = scmp.eq.s32.totalorder %s15, 15
    %p213 = scmp.ne.s32.totalorder %s208, %s210
    %p214 = scmp.eq.s32.totalorder %s15, 0
    %p215 = por %p213, %p214
    %p216 = scmp.ne.s32.totalorder %s208, %s210
    %p217 = scmp.eq.s32.totalorder %s20, 15
    %p218 = por %p216, %p217
    %p219 = scmp.ne.s32.totalorder %s210, %s211
    %p220 = scmp.eq.s32.totalorder %s20, 0
    %p221 = por %p219, %p220
    %p222 = scmp.ne.s32.totalorder %s210, %s211
    %p223 = scmp.eq.s32.totalorder %s21, 15
    %p224 = por %p222, %p223
    %p226 = scmp.ne.s32.totalorder %s211, %s225
    %p227 = scmp.eq.s32.totalorder %s21, 0
    %p228 = por %p226, %p227
    %s230 = sadd.s32 %s229, 1
    %p233 = scmp.eq.s32.totalorder %s15, 15
    %p234 = scmp.ne.s32.totalorder %s229, %s231
    %p235 = scmp.eq.s32.totalorder %s15, 0
    %p236 = por %p234, %p235
    %p237 = scmp.ne.s32.totalorder %s229, %s231
    %p238 = scmp.eq.s32.totalorder %s20, 15
    %p239 = por %p237, %p238
    %p240 = scmp.ne.s32.totalorder %s231, %s232
    %p241 = scmp.eq.s32.totalorder %s20, 0
    %p242 = por %p240, %p241
    %p243 = scmp.ne.s32.totalorder %s231, %s232
    %p244 = scmp.eq.s32.totalorder %s21, 15
    %p245 = por %p243, %p244
    %p247 = scmp.ne.s32.totalorder %s232, %s246
    %p248 = scmp.eq.s32.totalorder %s21, 0
    %p249 = por %p247, %p248
    %p250 = scmp.le.s32.totalorder 1, %s15
    %p251 = scmp.lt.s32.totalorder %s15, 17
    %p252 = pnand %p250, %p251
    %p253 = pneg %p252
    // Predicated region
    $region9: #{gumbel_rnn_discriminator.1} parent=5 // pred_check
      _
    $region10: #{gumbel_rnn_discriminator.1} parent=5 // pred_check_branch
      %255 = sbr.rel (%p252) target = $region12
    $region11: #{gumbel_rnn_discriminator.1} parent=5 // pred_region
      %s256 = ssub.s32 %s15, 1
      // Predicated region
      $region13: #{gumbel_rnn_discriminator.1} parent=11 // pred_check
        %p257 = pneg %p74
      $region14: #{gumbel_rnn_discriminator.1} parent=11 // pred_check_branch
        %259 = sbr.rel (%p257) target = $region16
      $region15: #{gumbel_rnn_discriminator.1} parent=11 // pred_region
        _
      $region16: #{gumbel_rnn_discriminator.1} parent=11 // pred_fallthru
        _
      // Predicated region
      $region17: #{gumbel_rnn_discriminator.1} parent=11 // pred_check
        %p260 = pneg %p95
      $region18: #{gumbel_rnn_discriminator.1} parent=11 // pred_check_branch
        %262 = sbr.rel (%p260) target = $region20
      $region19: #{gumbel_rnn_discriminator.1} parent=11 // pred_region
        _
      $region20: #{gumbel_rnn_discriminator.1} parent=11 // pred_fallthru
        _
      // Predicated region
      $region21: #{gumbel_rnn_discriminator.1} parent=11 // pred_check
        %p263 = pneg %p116
      $region22: #{gumbel_rnn_discriminator.1} parent=11 // pred_check_branch
        %265 = sbr.rel (%p263) target = $region24
      $region23: #{gumbel_rnn_discriminator.1} parent=11 // pred_region
        _
      $region24: #{gumbel_rnn_discriminator.1} parent=11 // pred_fallthru
        _
      // Predicated region
      $region25: #{gumbel_rnn_discriminator.1} parent=11 // pred_check
        %p266 = pneg %p137
      $region26: #{gumbel_rnn_discriminator.1} parent=11 // pred_check_branch
        %268 = sbr.rel (%p266) target = $region28
      $region27: #{gumbel_rnn_discriminator.1} parent=11 // pred_region
        _
      $region28: #{gumbel_rnn_discriminator.1} parent=11 // pred_fallthru
        _
      // Predicated region
      $region29: #{gumbel_rnn_discriminator.1} parent=11 // pred_check
        %p269 = pneg %p158
      $region30: #{gumbel_rnn_discriminator.1} parent=11 // pred_check_branch
        %271 = sbr.rel (%p269) target = $region32
      $region31: #{gumbel_rnn_discriminator.1} parent=11 // pred_region
        _
      $region32: #{gumbel_rnn_discriminator.1} parent=11 // pred_fallthru
        _
      // Predicated region
      $region33: #{gumbel_rnn_discriminator.1} parent=11 // pred_check
        %p272 = pneg %p179
      $region34: #{gumbel_rnn_discriminator.1} parent=11 // pred_check_branch
        %274 = sbr.rel (%p272) target = $region36
      $region35: #{gumbel_rnn_discriminator.1} parent=11 // pred_region
        _
      $region36: #{gumbel_rnn_discriminator.1} parent=11 // pred_fallthru
        _
      // Predicated region
      $region37: #{gumbel_rnn_discriminator.1} parent=11 // pred_check
        %p275 = pneg %p200
      $region38: #{gumbel_rnn_discriminator.1} parent=11 // pred_check_branch
        %277 = sbr.rel (%p275) target = $region40
      $region39: #{gumbel_rnn_discriminator.1} parent=11 // pred_region
        _
      $region40: #{gumbel_rnn_discriminator.1} parent=11 // pred_fallthru
        _
      // Predicated region
      $region41: #{gumbel_rnn_discriminator.1} parent=11 // pred_check
        %p278 = pneg %p221
      $region42: #{gumbel_rnn_discriminator.1} parent=11 // pred_check_branch
        %280 = sbr.rel (%p278) target = $region44
      $region43: #{gumbel_rnn_discriminator.1} parent=11 // pred_region
        _
      $region44: #{gumbel_rnn_discriminator.1} parent=11 // pred_fallthru
        _
    $region12: #{gumbel_rnn_discriminator.1} parent=5 // pred_fallthru
      _
    %p281 = scmp.lt.s32.totalorder %s15, 16
    // Predicated region
    $region45: #{gumbel_rnn_discriminator.1} parent=5 // pred_check
      %p282 = pneg %p281
    $region46: #{gumbel_rnn_discriminator.1} parent=5 // pred_check_branch
      %284 = sbr.rel (%p282) target = $region48
    $region47: #{gumbel_rnn_discriminator.1} parent=5 // pred_region
      // Predicated region
      $region49: #{gumbel_rnn_discriminator.1} parent=47 // pred_check
        %p285 = pneg %p47
      $region50: #{gumbel_rnn_discriminator.1} parent=47 // pred_check_branch
        %287 = sbr.rel (%p285) target = $region52
      $region51: #{gumbel_rnn_discriminator.1} parent=47 // pred_region
        %p288 = scmp.lt.s32.totalorder %s23, 7
        %s289 = scalar_select %p288, %s23, 7
        %s290 = smul.addr %s289, 8
        %s291 = scalar_lea.vmem %s0, %s290
      $region52: #{gumbel_rnn_discriminator.1} parent=47 // pred_fallthru
        _
    $region48: #{gumbel_rnn_discriminator.1} parent=5 // pred_fallthru
      _
    %p292 = scmp.le.s32.totalorder 1, %s15
    %p293 = scmp.lt.s32.totalorder %s15, 17
    %p294 = pnand %p292, %p293
    %p295 = pneg %p294
    // Predicated region
    $region53: #{gumbel_rnn_discriminator.1} parent=5 // pred_check
      _
    $region54: #{gumbel_rnn_discriminator.1} parent=5 // pred_check_branch
      %297 = sbr.rel (%p294) target = $region56
    $region55: #{gumbel_rnn_discriminator.1} parent=5 // pred_region
      %s298 = ssub.s32 %s15, 1
      %p299 = scmp.lt.s32.totalorder %s25, 7
      %s300 = scalar_select %p299, %s25, 7
      %s301 = smul.addr %s300, 8
      %s302 = scalar_lea.vmem %s0, %s301
      %p303 = pneg %p53
      %p304 = pneg %p50
      %p305 = pneg %p74
      %p306 = pneg %p71
      %p307 = pneg %p95
      %p308 = pneg %p92
      %p309 = pneg %p116
      %p310 = pneg %p113
      %p311 = pneg %p137
      %p312 = pneg %p134
      %p313 = pneg %p158
      %p314 = pneg %p155
      %p315 = pneg %p179
      %p316 = pneg %p176
      %p317 = pneg %p200
      %p318 = pneg %p197
      %p319 = pneg %p221
      %p320 = pneg %p218
      %p321 = pneg %p242
      %p322 = pneg %p239
      %p323 = scmp.lt.s32.totalorder %s25, 7
      %s324 = scalar_select %p323, %s25, 7
      %s325 = smul.addr %s324, 8
      %s326 = scalar_lea.vmem %s0, %s325
      %v328 = vld [vmem:[%s326] sm:$0xff]
      %v329 = vpack.c.bf16 %v328, %v328
      %v330 = vld [vmem:[%s1] sm:$0xf]
      %v331 = vld [vmem:[%s2] sm:$0x1]
      %v333 = vlaneseq
      %v334 = vshrl.u32 %v333, 7
      %v335 = vsub.s32 0, %v334
      %v336 = vrot.slane %v331, %v335
      %vm338 = vcmask 64512
      %v340 = vsel %vm338, %v329, 0
      %vm342 = vcmask 1043456
      %v344 = vsel %vm342, %v330, 0
      %346 = vmatprep.subr.bf16.mxu0 0
      %347 = vmatpush1.bf16.msra.mxu0 %v344
      %348 = vmatprep.subr.bf16.mxu0 0
      %349 = vmatpush1.bf16.msra.mxu0 0
      %350 = vmatprep.subr.bf16.mxu0 0
      %351 = vmatpush1.bf16.msra.mxu0 0
      %352 = vmatprep.subr.bf16.mxu0 0
      %353 = vmatpush1.bf16.msra.mxu0 0
      %354 = vmatprep.subr.bf16.mxu0 0
      %355 = vmatpush1.bf16.msra.mxu0 0
      %356 = vmatprep.subr.bf16.mxu0 0
      %357 = vmatpush1.bf16.msra.mxu0 0
      %358 = vmatprep.subr.bf16.mxu0 0
      %359 = vmatpush1.bf16.msra.mxu0 0
      %360 = vmatprep.subr.bf16.mxu0 0
      %361 = vmatpush1.bf16.msra.mxu0 0
      %362 = vmatprep.subr.bf16.mxu0 0
      %363 = vmatpush1.bf16.msra.mxu0 0
      %364 = vmatprep.subr.bf16.mxu0 0
      %365 = vmatpush1.bf16.msra.mxu0 0
      %366 = vmatprep.subr.bf16.mxu0 0
      %367 = vmatpush1.bf16.msra.mxu0 0
      %368 = vmatprep.subr.bf16.mxu0 0
      %369 = vmatpush1.bf16.msra.mxu0 0
      %370 = vmatprep.subr.bf16.mxu0 0
      %371 = vmatpush1.bf16.msra.mxu0 0
      %372 = vmatprep.subr.bf16.mxu0 0
      %373 = vmatpush1.bf16.msra.mxu0 0
      %374 = vmatprep.subr.bf16.mxu0 0
      %375 = vmatpush1.bf16.msra.mxu0 0
      %376 = vmatprep.subr.bf16.mxu0 0
      %377 = vmatpush1.bf16.msra.mxu0 0
      %378 = vmatprep.mubr.bf16.mxu0 0
      %379 = vmatmul.mubr.bf16.gmra.mrb[0].mxu0 %v340
      %v380 = vpop.f32.mrb[0].mxu0
      %v381 = vadd.f32 %v336, %v380
      %v382 = vpop.f32.mrb[0].mxu0
      %v383 = vpop.f32.mrb[0].mxu0
      %v384 = vpop.f32.mrb[0].mxu0
      %385 = vdwg.mxu0
      %v386 = vmul.f32 %v381, 0.2
      %v387 = vmax.f32 %v381, %v386
      %p388 = scmp.eq.s32.totalorder %s24, 0
      // Predicated region
      $region57: #{gumbel_rnn_discriminator.1} parent=55 // pred_check
        %p389 = pneg %p388
      $region58: #{gumbel_rnn_discriminator.1} parent=55 // pred_check_branch
        %391 = sbr.rel (%p389) target = $region60
      $region59: #{gumbel_rnn_discriminator.1} parent=55 // pred_region
        %p392 = scmp.eq.s32.totalorder %s25, 0
        // Predicated region
        $region61: #{gumbel_rnn_discriminator.1} parent=59 // pred_check
          %p393 = pneg %p392
        $region62: #{gumbel_rnn_discriminator.1} parent=59 // pred_check_branch
          %395 = sbr.rel (%p393) target = $region64
        $region63: #{gumbel_rnn_discriminator.1} parent=59 // pred_region
          %396 = vst [vmem:[#allocation2] sm:$0x1] 0.0
          %397 = vst [vmem:[#allocation3] sm:$0x1] 0.0
        $region64: #{gumbel_rnn_discriminator.1} parent=59 // pred_fallthru
          _
        %v398 = vlaneseq
        %v399 = vshrl.u32 %v398, 7
        %vm400 = vcmp.lt.s32.totalorder %v399, 2
        %v401 = vsel %vm400, %v387, 0.0
        %v402 = vld [vmem:[#allocation2] sm:$0x1]
        %v403 = vrot.slane %v401, 4
        %v404 = vadd.f32 %v401, %v403
        %v405 = vrot.slane %v404, 2
        %v406 = vadd.f32 %v404, %v405
        %v407 = vrot.slane %v406, 1
        %v408 = vadd.f32 %v406, %v407
        %v409 = vadd.f32 %v402, %v408
        %410 = vst [vmem:[#allocation2] sm:$0x1] %v409
        %v411 = vld [vmem:[#allocation3] sm:$0x1]
        %v412 = vmul.f32 %v401, %v401
        %v413 = vrot.slane %v412, 4
        %v414 = vadd.f32 %v412, %v413
        %v415 = vrot.slane %v414, 2
        %v416 = vadd.f32 %v414, %v415
        %v417 = vrot.slane %v416, 1
        %v418 = vadd.f32 %v416, %v417
        %v419 = vadd.f32 %v411, %v418
        %420 = vst [vmem:[#allocation3] sm:$0x1] %v419
      $region60: #{gumbel_rnn_discriminator.1} parent=55 // pred_fallthru
        _
      %p421 = scmp.eq.s32.totalorder %s24, 1
      // Predicated region
      $region65: #{gumbel_rnn_discriminator.1} parent=55 // pred_check
        %p422 = pneg %p421
      $region66: #{gumbel_rnn_discriminator.1} parent=55 // pred_check_branch
        %424 = sbr.rel (%p422) target = $region68
      $region67: #{gumbel_rnn_discriminator.1} parent=55 // pred_region
        %p425 = scmp.eq.s32.totalorder %s25, 0
        // Predicated region
        $region69: #{gumbel_rnn_discriminator.1} parent=67 // pred_check
          %p426 = pneg %p425
        $region70: #{gumbel_rnn_discriminator.1} parent=67 // pred_check_branch
          %428 = sbr.rel (%p426) target = $region72
        $region71: #{gumbel_rnn_discriminator.1} parent=67 // pred_region
          %v429 = vld [vmem:[#allocation2] sm:$0x1]
          %v430 = vmul.f32 %v429, 0.0625
          %v431 = vld [vmem:[#allocation3] sm:$0x1]
          %v432 = vmul.f32 %v431, 0.0625
          %v433 = vmul.f32 %v430, %v430
          %v434 = vsub.f32 %v432, %v433
          %v435 = vmax.f32 %v434, 0.0
          %v436 = vld [vmem:[%s3] sm:$0x1]
          %v437 = vadd.f32 %v435, 1e-05
          %v438 = vrsqrt.pop %v437
          %v439 = vmul.f32 %v436, %v438
          %v440 = vld [vmem:[%s4] sm:$0x1]
          %v441 = vmul.f32 %v430, %v439
          %v442 = vsub.f32 %v440, %v441
          %443 = vst [vmem:[#allocation4] sm:$0x1] %v439
          %v444 = vpack.c.bf16 %v442, %v442
          %v445 = vld [vmem:[%s5] sm:$0xff]
          %v446 = vld [vmem:[%s5 + $0x8] sm:$0xf]
          %v447 = vld [vmem:[%s5 + $0xc] sm:$0xff]
          %v448 = vld [vmem:[%s5 + $0x14] sm:$0xf]
          %v449 = vld [vmem:[%s5 + $0x18] sm:$0xff]
          %v450 = vld [vmem:[%s5 + $0x20] sm:$0xf]
          %v451 = vld [vmem:[%s5 + $0x24] sm:$0xff]
          %v452 = vld [vmem:[%s5 + $0x2c] sm:$0xf]
          %v453 = vld [vmem:[%s5 + $0x30] sm:$0xff]
          %v454 = vld [vmem:[%s5 + $0x38] sm:$0xf]
          %v455 = vld [vmem:[%s5 + $0x3c] sm:$0xff]
          %v456 = vld [vmem:[%s5 + $0x44] sm:$0xf]
          %v457 = vld [vmem:[%s5 + $0x48] sm:$0xff]
          %v458 = vld [vmem:[%s5 + $0x50] sm:$0xf]
          %v459 = vld [vmem:[%s5 + $0x54] sm:$0xff]
          %v460 = vld [vmem:[%s5 + $0x5c] sm:$0xf]
          %v461 = vld [vmem:[%s5 + $0x60] sm:$0xff]
          %v462 = vld [vmem:[%s5 + $0x68] sm:$0xf]
          %v463 = vld [vmem:[%s5 + $0x6c] sm:$0xff]
          %v464 = vld [vmem:[%s5 + $0x74] sm:$0xf]
          %v465 = vld [vmem:[%s5 + $0x78] sm:$0xff]
          %v466 = vld [vmem:[%s5 + $0x80] sm:$0xf]
          %v467 = vld [vmem:[%s5 + $0x84] sm:$0xff]
          %v468 = vld [vmem:[%s5 + $0x8c] sm:$0xf]
          %v469 = vld [vmem:[%s5 + $0x90] sm:$0xff]
          %v470 = vld [vmem:[%s5 + $0x98] sm:$0xf]
          %v471 = vld [vmem:[%s5 + $0x9c] sm:$0xff]
          %v472 = vld [vmem:[%s5 + $0xa4] sm:$0xf]
          %v473 = vld [vmem:[%s5 + $0xa8] sm:$0xff]
          %v474 = vld [vmem:[%s5 + $0xb0] sm:$0xf]
          %v475 = vld [vmem:[%s5 + $0xb4] sm:$0xff]
          %v476 = vld [vmem:[%s5 + $0xbc] sm:$0xf]
          %v477 = vld [vmem:[%s6] sm:$0x7]
          %v510 = vunpack.c.l.b16 %v445
          %v511 = vunpack.c.h.b16 %v445
          %v512 = vunpack.c.l.b16 %v446
          %v513 = vunpack.c.l.b16 %v447
          %v514 = vunpack.c.h.b16 %v447
          %v515 = vunpack.c.l.b16 %v448
          %v516 = vunpack.c.l.b16 %v449
          %v517 = vunpack.c.h.b16 %v449
          %v518 = vunpack.c.l.b16 %v450
          %v519 = vunpack.c.l.b16 %v451
          %v520 = vunpack.c.h.b16 %v451
          %v521 = vunpack.c.l.b16 %v452
          %v522 = vunpack.c.l.b16 %v453
          %v523 = vunpack.c.h.b16 %v453
          %v524 = vunpack.c.l.b16 %v454
          %v525 = vunpack.c.l.b16 %v455
          %v526 = vunpack.c.h.b16 %v455
          %v527 = vunpack.c.l.b16 %v456
          %v528 = vunpack.c.l.b16 %v457
          %v529 = vunpack.c.h.b16 %v457
          %v530 = vunpack.c.l.b16 %v458
          %v531 = vunpack.c.l.b16 %v459
          %v532 = vunpack.c.h.b16 %v459
          %v533 = vunpack.c.l.b16 %v460
          %v534 = vunpack.c.l.b16 %v461
          %v535 = vunpack.c.h.b16 %v461
          %v536 = vunpack.c.l.b16 %v462
          %v537 = vunpack.c.l.b16 %v463
          %v538 = vunpack.c.h.b16 %v463
          %v539 = vunpack.c.l.b16 %v464
          %v540 = vunpack.c.l.b16 %v465
          %v541 = vunpack.c.h.b16 %v465
          %v542 = vunpack.c.l.b16 %v466
          %v543 = vunpack.c.l.b16 %v467
          %v544 = vunpack.c.h.b16 %v467
          %v545 = vunpack.c.l.b16 %v468
          %v546 = vunpack.c.l.b16 %v469
          %v547 = vunpack.c.h.b16 %v469
          %v548 = vunpack.c.l.b16 %v470
          %v549 = vunpack.c.l.b16 %v471
          %v550 = vunpack.c.h.b16 %v471
          %v551 = vunpack.c.l.b16 %v472
          %v552 = vunpack.c.l.b16 %v473
          %v553 = vunpack.c.h.b16 %v473
          %v554 = vunpack.c.l.b16 %v474
          %v555 = vunpack.c.l.b16 %v475
          %v556 = vunpack.c.h.b16 %v475
          %v557 = vunpack.c.l.b16 %v476
          %v558 = vpack.c.b16 %v513, %v510
          %v559 = vpack.c.b16 %v514, %v511
          %v560 = vpack.c.b16 %v515, %v512
          %v561 = vpack.c.b16 %v519, %v516
          %v562 = vpack.c.b16 %v520, %v517
          %v563 = vpack.c.b16 %v521, %v518
          %v564 = vpack.c.b16 %v525, %v522
          %v565 = vpack.c.b16 %v526, %v523
          %v566 = vpack.c.b16 %v527, %v524
          %v567 = vpack.c.b16 %v531, %v528
          %v568 = vpack.c.b16 %v532, %v529
          %v569 = vpack.c.b16 %v533, %v530
          %v570 = vpack.c.b16 %v537, %v534
          %v571 = vpack.c.b16 %v538, %v535
          %v572 = vpack.c.b16 %v539, %v536
          %v573 = vpack.c.b16 %v543, %v540
          %v574 = vpack.c.b16 %v544, %v541
          %v575 = vpack.c.b16 %v545, %v542
          %v576 = vpack.c.b16 %v549, %v546
          %v577 = vpack.c.b16 %v550, %v547
          %v578 = vpack.c.b16 %v551, %v548
          %v579 = vpack.c.b16 %v555, %v552
          %v580 = vpack.c.b16 %v556, %v553
          %v581 = vpack.c.b16 %v557, %v554
          %v607 = vlaneseq
          %v608 = vshrl.u32 %v607, 7
          %v609 = vsub.s32 0, %v608
          %v610 = vrot.slane %v477, %v609
          %v611 = vlaneseq
          %v612 = vshrl.u32 %v611, 7
          %v613 = vsub.s32 1, %v612
          %v614 = vrot.slane %v477, %v613
          %v615 = vlaneseq
          %v616 = vshrl.u32 %v615, 7
          %v617 = vsub.s32 2, %v616
          %v618 = vrot.slane %v477, %v617
          %622 = vmatprep.subr.bf16.mxu0 %v559
          %623 = vmatpush1.bf16.msra.mxu0 %v558
          %624 = vmatprep.subr.bf16.mxu0 %v562
          %625 = vmatpush1.bf16.msra.mxu0 %v561
          %626 = vmatprep.subr.bf16.mxu0 %v565
          %627 = vmatpush1.bf16.msra.mxu0 %v564
          %628 = vmatprep.subr.bf16.mxu0 %v568
          %629 = vmatpush1.bf16.msra.mxu0 %v567
          %630 = vmatprep.subr.bf16.mxu0 %v571
          %631 = vmatpush1.bf16.msra.mxu0 %v570
          %632 = vmatprep.subr.bf16.mxu0 %v574
          %633 = vmatpush1.bf16.msra.mxu0 %v573
          %634 = vmatprep.subr.bf16.mxu0 %v577
          %635 = vmatpush1.bf16.msra.mxu0 %v576
          %636 = vmatprep.subr.bf16.mxu0 %v580
          %637 = vmatpush1.bf16.msra.mxu0 %v579
          %638 = vmatprep.subr.bf16.mxu0 0
          %639 = vmatpush1.bf16.msra.mxu0 0
          %640 = vmatprep.subr.bf16.mxu0 0
          %641 = vmatpush1.bf16.msra.mxu0 0
          %642 = vmatprep.subr.bf16.mxu0 0
          %643 = vmatpush1.bf16.msra.mxu0 0
          %644 = vmatprep.subr.bf16.mxu0 0
          %645 = vmatpush1.bf16.msra.mxu0 0
          %646 = vmatprep.subr.bf16.mxu0 0
          %647 = vmatpush1.bf16.msra.mxu0 0
          %648 = vmatprep.subr.bf16.mxu0 0
          %649 = vmatpush1.bf16.msra.mxu0 0
          %650 = vmatprep.subr.bf16.mxu0 0
          %651 = vmatpush1.bf16.msra.mxu0 0
          %652 = vmatprep.subr.bf16.mxu0 0
          %653 = vmatpush1.bf16.msra.mxu0 0
          %654 = vmatprep.mubr.bf16.mxu0 0
          %655 = vmatmul.mubr.bf16.gmra.mrb[0].mxu0 %v444
          %v656 = vpop.f32.mrb[0].mxu0
          %v657 = vadd.f32 %v610, %v656
          %v658 = vpop.f32.mrb[0].mxu0
          %v659 = vadd.f32 %v614, %v658
          %v660 = vpop.f32.mrb[0].mxu0
          %v661 = vpop.f32.mrb[0].mxu0
          %662 = vdwg.mxu0
          %663 = vmatprep.subr.bf16.mxu0 0
          %664 = vmatpush1.bf16.msra.mxu0 %v560
          %665 = vmatprep.subr.bf16.mxu0 0
          %666 = vmatpush1.bf16.msra.mxu0 %v563
          %667 = vmatprep.subr.bf16.mxu0 0
          %668 = vmatpush1.bf16.msra.mxu0 %v566
          %669 = vmatprep.subr.bf16.mxu0 0
          %670 = vmatpush1.bf16.msra.mxu0 %v569
          %671 = vmatprep.subr.bf16.mxu0 0
          %672 = vmatpush1.bf16.msra.mxu0 %v572
          %673 = vmatprep.subr.bf16.mxu0 0
          %674 = vmatpush1.bf16.msra.mxu0 %v575
          %675 = vmatprep.subr.bf16.mxu0 0
          %676 = vmatpush1.bf16.msra.mxu0 %v578
          %677 = vmatprep.subr.bf16.mxu0 0
          %678 = vmatpush1.bf16.msra.mxu0 %v581
          %679 = vmatprep.subr.bf16.mxu0 0
          %680 = vmatpush1.bf16.msra.mxu0 0
          %681 = vmatprep.subr.bf16.mxu0 0
          %682 = vmatpush1.bf16.msra.mxu0 0
          %683 = vmatprep.subr.bf16.mxu0 0
          %684 = vmatpush1.bf16.msra.mxu0 0
          %685 = vmatprep.subr.bf16.mxu0 0
          %686 = vmatpush1.bf16.msra.mxu0 0
          %687 = vmatprep.subr.bf16.mxu0 0
          %688 = vmatpush1.bf16.msra.mxu0 0
          %689 = vmatprep.subr.bf16.mxu0 0
          %690 = vmatpush1.bf16.msra.mxu0 0
          %691 = vmatprep.subr.bf16.mxu0 0
          %692 = vmatpush1.bf16.msra.mxu0 0
          %693 = vmatprep.subr.bf16.mxu0 0
          %694 = vmatpush1.bf16.msra.mxu0 0
          %695 = vmatprep.mubr.bf16.mxu0 0
          %696 = vmatmul.mubr.bf16.gmra.mrb[0].mxu0 %v444
          %v697 = vpop.f32.mrb[0].mxu0
          %v698 = vadd.f32 %v618, %v697
          %v699 = vpop.f32.mrb[0].mxu0
          %v700 = vpop.f32.mrb[0].mxu0
          %v701 = vpop.f32.mrb[0].mxu0
          %702 = vdwg.mxu0
          %v706 = vcombine.low %v657, %v659
          %v708 = vunpack.c.l.s4 1966171168
          %v709 = vunpack.c.0.s8 %v708
          %v710 = vlaneseq
          %v711 = vshrl.u32 %v710, 7
          %v712 = vsub.s32 %v709, %v711
          %v713 = vrot.slane %v706, %v712
          %v715 = vunpack.c.l.s4 1966171168
          %v716 = vunpack.c.0.s8 %v715
          %v717 = vlaneseq
          %v718 = vshrl.u32 %v717, 7
          %v719 = vsub.s32 %v716, %v718
          %v720 = vrot.slane %v698, %v719
          %v721 = vcombine.low %v713, %v720
          %v723 = vunpack.c.l.s4 1966171168
          %v724 = vunpack.c.0.s8 %v723
          %v725 = vlaneseq
          %v726 = vshrl.u32 %v725, 7
          %v727 = vsub.s32 %v724, %v726
          %v728 = vrot.slane %v721, %v727
          %v730 = vlaneseq
          %vm731 = vcmp.ge.s32.totalorder %v730, 0
          %vm732 = vcmp.lt.s32.totalorder %v730, 384
          %vm733 = vmand %vm731, %vm732
          %734 = vst.msk [vmem:[#allocation5] sm:$0x7] %vm733, %v728
          %735 = vst [vmem:[%s9] sm:$0xff] 0.0
        $region72: #{gumbel_rnn_discriminator.1} parent=67 // pred_fallthru
          _
        %v736 = vld [vmem:[%s7] sm:$0xff]
        %v737 = vld [vmem:[%s7 + $0x8] sm:$0xff]
        %v738 = vld [vmem:[%s7 + $0x10] sm:$0xff]
        %v739 = vld [vmem:[%s7 + $0x18] sm:$0xff]
        %v740 = vld [vmem:[%s7 + $0x20] sm:$0xff]
        %v741 = vld [vmem:[%s7 + $0x28] sm:$0xff]
        %v742 = vld [vmem:[%s7 + $0x30] sm:$0xff]
        %v743 = vld [vmem:[%s7 + $0x38] sm:$0xff]
        %v744 = vld [vmem:[%s7 + $0x40] sm:$0xff]
        %v745 = vld [vmem:[%s7 + $0x48] sm:$0xff]
        %v746 = vld [vmem:[%s7 + $0x50] sm:$0xff]
        %v747 = vld [vmem:[%s7 + $0x58] sm:$0xff]
        %v748 = vld [vmem:[%s7 + $0x60] sm:$0xff]
        %v749 = vld [vmem:[%s7 + $0x68] sm:$0xff]
        %v750 = vld [vmem:[%s7 + $0x70] sm:$0xff]
        %v751 = vld [vmem:[%s7 + $0x78] sm:$0xff]
        %v752 = vld [vmem:[%s7 + $0x80] sm:$0xff]
        %v753 = vld [vmem:[%s7 + $0x88] sm:$0xff]
        %v754 = vld [vmem:[%s7 + $0x90] sm:$0xff]
        %v755 = vld [vmem:[%s7 + $0x98] sm:$0xff]
        %v756 = vld [vmem:[%s7 + $0xa0] sm:$0xff]
        %v757 = vld [vmem:[%s7 + $0xa8] sm:$0xff]
        %v758 = vld [vmem:[%s7 + $0xb0] sm:$0xff]
        %v759 = vld [vmem:[%s7 + $0xb8] sm:$0xff]
        %v760 = vld [vmem:[%s7 + $0xc0] sm:$0xff]
        %v761 = vld [vmem:[%s7 + $0xc8] sm:$0xff]
        %v762 = vld [vmem:[%s7 + $0xd0] sm:$0xff]
        %v763 = vld [vmem:[%s7 + $0xd8] sm:$0xff]
        %v764 = vld [vmem:[%s7 + $0xe0] sm:$0xff]
        %v765 = vld [vmem:[%s7 + $0xe8] sm:$0xff]
        %v766 = vld [vmem:[%s7 + $0xf0] sm:$0xff]
        %v767 = vld [vmem:[%s7 + $0xf8] sm:$0xff]
        %v768 = vld [vmem:[%s7 + $0x100] sm:$0xff]
        %v769 = vld [vmem:[%s7 + $0x108] sm:$0xff]
        %v770 = vld [vmem:[%s7 + $0x110] sm:$0xff]
        %v771 = vld [vmem:[%s7 + $0x118] sm:$0xff]
        %v772 = vld [vmem:[%s7 + $0x120] sm:$0xff]
        %v773 = vld [vmem:[%s7 + $0x128] sm:$0xff]
        %v774 = vld [vmem:[%s7 + $0x130] sm:$0xff]
        %v775 = vld [vmem:[%s7 + $0x138] sm:$0xff]
        %v776 = vld [vmem:[%s7 + $0x140] sm:$0xff]
        %v777 = vld [vmem:[%s7 + $0x148] sm:$0xff]
        %v778 = vld [vmem:[%s7 + $0x150] sm:$0xff]
        %v779 = vld [vmem:[%s7 + $0x158] sm:$0xff]
        %v780 = vld [vmem:[%s7 + $0x160] sm:$0xff]
        %v781 = vld [vmem:[%s7 + $0x168] sm:$0xff]
        %v782 = vld [vmem:[%s7 + $0x170] sm:$0xff]
        %v783 = vld [vmem:[%s7 + $0x178] sm:$0xff]
        %v784 = vld [vmem:[%s8] sm:$0x7]
        %v785 = vld [vmem:[%s9] sm:$0xff]
        %v786 = vld [vmem:[#allocation4] sm:$0x1]
        %v788 = vlaneseq
        %v789 = vshrl.u32 %v788, 7
        %v790 = vsub.s32 0, %v789
        %v791 = vrot.slane %v786, %v790
        %v793 = vmul.f32 %v387, %v791
        %v794 = vpack.c.bf16 %v793, %v793
        %v795 = vld [vmem:[%s5] sm:$0xff]
        %v796 = vld [vmem:[%s5 + $0x8] sm:$0xf]
        %v797 = vld [vmem:[%s5 + $0xc] sm:$0xff]
        %v798 = vld [vmem:[%s5 + $0x14] sm:$0xf]
        %v799 = vld [vmem:[%s5 + $0x18] sm:$0xff]
        %v800 = vld [vmem:[%s5 + $0x20] sm:$0xf]
        %v801 = vld [vmem:[%s5 + $0x24] sm:$0xff]
        %v802 = vld [vmem:[%s5 + $0x2c] sm:$0xf]
        %v803 = vld [vmem:[%s5 + $0x30] sm:$0xff]
        %v804 = vld [vmem:[%s5 + $0x38] sm:$0xf]
        %v805 = vld [vmem:[%s5 + $0x3c] sm:$0xff]
        %v806 = vld [vmem:[%s5 + $0x44] sm:$0xf]
        %v807 = vld [vmem:[%s5 + $0x48] sm:$0xff]
        %v808 = vld [vmem:[%s5 + $0x50] sm:$0xf]
        %v809 = vld [vmem:[%s5 + $0x54] sm:$0xff]
        %v810 = vld [vmem:[%s5 + $0x5c] sm:$0xf]
        %v811 = vld [vmem:[%s5 + $0x60] sm:$0xff]
        %v812 = vld [vmem:[%s5 + $0x68] sm:$0xf]
        %v813 = vld [vmem:[%s5 + $0x6c] sm:$0xff]
        %v814 = vld [vmem:[%s5 + $0x74] sm:$0xf]
        %v815 = vld [vmem:[%s5 + $0x78] sm:$0xff]
        %v816 = vld [vmem:[%s5 + $0x80] sm:$0xf]
        %v817 = vld [vmem:[%s5 + $0x84] sm:$0xff]
        %v818 = vld [vmem:[%s5 + $0x8c] sm:$0xf]
        %v819 = vld [vmem:[%s5 + $0x90] sm:$0xff]
        %v820 = vld [vmem:[%s5 + $0x98] sm:$0xf]
        %v821 = vld [vmem:[%s5 + $0x9c] sm:$0xff]
        %v822 = vld [vmem:[%s5 + $0xa4] sm:$0xf]
        %v823 = vld [vmem:[%s5 + $0xa8] sm:$0xff]
        %v824 = vld [vmem:[%s5 + $0xb0] sm:$0xf]
        %v825 = vld [vmem:[%s5 + $0xb4] sm:$0xff]
        %v826 = vld [vmem:[%s5 + $0xbc] sm:$0xf]
        %v827 = vld [vmem:[#allocation5] sm:$0x7]
        %v829 = vlaneseq
        %v830 = vshrl.u32 %v829, 7
        %v831 = vsub.s32 0, %v830
        %v832 = vrot.slane %v827, %v831
        %v833 = vlaneseq
        %v834 = vshrl.u32 %v833, 7
        %v835 = vsub.s32 1, %v834
        %v836 = vrot.slane %v827, %v835
        %v837 = vlaneseq
        %v838 = vshrl.u32 %v837, 7
        %v839 = vsub.s32 2, %v838
        %v840 = vrot.slane %v827, %v839
        %v876 = vunpack.c.l.b16 %v795
        %v877 = vunpack.c.h.b16 %v795
        %v878 = vunpack.c.l.b16 %v796
        %v879 = vunpack.c.l.b16 %v797
        %v880 = vunpack.c.h.b16 %v797
        %v881 = vunpack.c.l.b16 %v798
        %v882 = vunpack.c.l.b16 %v799
        %v883 = vunpack.c.h.b16 %v799
        %v884 = vunpack.c.l.b16 %v800
        %v885 = vunpack.c.l.b16 %v801
        %v886 = vunpack.c.h.b16 %v801
        %v887 = vunpack.c.l.b16 %v802
        %v888 = vunpack.c.l.b16 %v803
        %v889 = vunpack.c.h.b16 %v803
        %v890 = vunpack.c.l.b16 %v804
        %v891 = vunpack.c.l.b16 %v805
        %v892 = vunpack.c.h.b16 %v805
        %v893 = vunpack.c.l.b16 %v806
        %v894 = vunpack.c.l.b16 %v807
        %v895 = vunpack.c.h.b16 %v807
        %v896 = vunpack.c.l.b16 %v808
        %v897 = vunpack.c.l.b16 %v809
        %v898 = vunpack.c.h.b16 %v809
        %v899 = vunpack.c.l.b16 %v810
        %v900 = vunpack.c.l.b16 %v811
        %v901 = vunpack.c.h.b16 %v811
        %v902 = vunpack.c.l.b16 %v812
        %v903 = vunpack.c.l.b16 %v813
        %v904 = vunpack.c.h.b16 %v813
        %v905 = vunpack.c.l.b16 %v814
        %v906 = vunpack.c.l.b16 %v815
        %v907 = vunpack.c.h.b16 %v815
        %v908 = vunpack.c.l.b16 %v816
        %v909 = vunpack.c.l.b16 %v817
        %v910 = vunpack.c.h.b16 %v817
        %v911 = vunpack.c.l.b16 %v818
        %v912 = vunpack.c.l.b16 %v819
        %v913 = vunpack.c.h.b16 %v819
        %v914 = vunpack.c.l.b16 %v820
        %v915 = vunpack.c.l.b16 %v821
        %v916 = vunpack.c.h.b16 %v821
        %v917 = vunpack.c.l.b16 %v822
        %v918 = vunpack.c.l.b16 %v823
        %v919 = vunpack.c.h.b16 %v823
        %v920 = vunpack.c.l.b16 %v824
        %v921 = vunpack.c.l.b16 %v825
        %v922 = vunpack.c.h.b16 %v825
        %v923 = vunpack.c.l.b16 %v826
        %v924 = vpack.c.b16 %v879, %v876
        %v925 = vpack.c.b16 %v880, %v877
        %v926 = vpack.c.b16 %v881, %v878
        %v927 = vpack.c.b16 %v885, %v882
        %v928 = vpack.c.b16 %v886, %v883
        %v929 = vpack.c.b16 %v887, %v884
        %v930 = vpack.c.b16 %v891, %v888
        %v931 = vpack.c.b16 %v892, %v889
        %v932 = vpack.c.b16 %v893, %v890
        %v933 = vpack.c.b16 %v897, %v894
        %v934 = vpack.c.b16 %v898, %v895
        %v935 = vpack.c.b16 %v899, %v896
        %v936 = vpack.c.b16 %v903, %v900
        %v937 = vpack.c.b16 %v904, %v901
        %v938 = vpack.c.b16 %v905, %v902
        %v939 = vpack.c.b16 %v909, %v906
        %v940 = vpack.c.b16 %v910, %v907
        %v941 = vpack.c.b16 %v911, %v908
        %v942 = vpack.c.b16 %v915, %v912
        %v943 = vpack.c.b16 %v916, %v913
        %v944 = vpack.c.b16 %v917, %v914
        %v945 = vpack.c.b16 %v921, %v918
        %v946 = vpack.c.b16 %v922, %v919
        %v947 = vpack.c.b16 %v923, %v920
        %972 = vmatprep.subr.bf16.mxu0 %v925
        %973 = vmatpush1.bf16.msra.mxu0 %v924
        %974 = vmatprep.subr.bf16.mxu0 %v928
        %975 = vmatpush1.bf16.msra.mxu0 %v927
        %976 = vmatprep.subr.bf16.mxu0 %v931
        %977 = vmatpush1.bf16.msra.mxu0 %v930
        %978 = vmatprep.subr.bf16.mxu0 %v934
        %979 = vmatpush1.bf16.msra.mxu0 %v933
        %980 = vmatprep.subr.bf16.mxu0 %v937
        %981 = vmatpush1.bf16.msra.mxu0 %v936
        %982 = vmatprep.subr.bf16.mxu0 %v940
        %983 = vmatpush1.bf16.msra.mxu0 %v939
        %984 = vmatprep.subr.bf16.mxu0 %v943
        %985 = vmatpush1.bf16.msra.mxu0 %v942
        %986 = vmatprep.subr.bf16.mxu0 %v946
        %987 = vmatpush1.bf16.msra.mxu0 %v945
        %988 = vmatprep.subr.bf16.mxu0 0
        %989 = vmatpush1.bf16.msra.mxu0 0
        %990 = vmatprep.subr.bf16.mxu0 0
        %991 = vmatpush1.bf16.msra.mxu0 0
        %992 = vmatprep.subr.bf16.mxu0 0
        %993 = vmatpush1.bf16.msra.mxu0 0
        %994 = vmatprep.subr.bf16.mxu0 0
        %995 = vmatpush1.bf16.msra.mxu0 0
        %996 = vmatprep.subr.bf16.mxu0 0
        %997 = vmatpush1.bf16.msra.mxu0 0
        %998 = vmatprep.subr.bf16.mxu0 0
        %999 = vmatpush1.bf16.msra.mxu0 0
        %1000 = vmatprep.subr.bf16.mxu0 0
        %1001 = vmatpush1.bf16.msra.mxu0 0
        %1002 = vmatprep.subr.bf16.mxu0 0
        %1003 = vmatpush1.bf16.msra.mxu0 0
        %1004 = vmatprep.mubr.bf16.mxu0 0
        %1005 = vmatmul.mubr.bf16.gmra.mrb[0].mxu0 %v794
        %v1006 = vpop.f32.mrb[0].mxu0
        %v1007 = vadd.f32 %v832, %v1006
        %v1008 = vpop.f32.mrb[0].mxu0
        %v1009 = vadd.f32 %v836, %v1008
        %v1010 = vpop.f32.mrb[0].mxu0
        %v1011 = vpop.f32.mrb[0].mxu0
        %1012 = vdwg.mxu0
        %1013 = vmatprep.subr.bf16.mxu0 0
        %1014 = vmatpush1.bf16.msra.mxu0 %v926
        %1015 = vmatprep.subr.bf16.mxu0 0
        %1016 = vmatpush1.bf16.msra.mxu0 %v929
        %1017 = vmatprep.subr.bf16.mxu0 0
        %1018 = vmatpush1.bf16.msra.mxu0 %v932
        %1019 = vmatprep.subr.bf16.mxu0 0
        %1020 = vmatpush1.bf16.msra.mxu0 %v935
        %1021 = vmatprep.subr.bf16.mxu0 0
        %1022 = vmatpush1.bf16.msra.mxu0 %v938
        %1023 = vmatprep.subr.bf16.mxu0 0
        %1024 = vmatpush1.bf16.msra.mxu0 %v941
        %1025 = vmatprep.subr.bf16.mxu0 0
        %1026 = vmatpush1.bf16.msra.mxu0 %v944
        %1027 = vmatprep.subr.bf16.mxu0 0
        %1028 = vmatpush1.bf16.msra.mxu0 %v947
        %1029 = vmatprep.subr.bf16.mxu0 0
        %1030 = vmatpush1.bf16.msra.mxu0 0
        %1031 = vmatprep.subr.bf16.mxu0 0
        %1032 = vmatpush1.bf16.msra.mxu0 0
        %1033 = vmatprep.subr.bf16.mxu0 0
        %1034 = vmatpush1.bf16.msra.mxu0 0
        %1035 = vmatprep.subr.bf16.mxu0 0
        %1036 = vmatpush1.bf16.msra.mxu0 0
        %1037 = vmatprep.subr.bf16.mxu0 0
        %1038 = vmatpush1.bf16.msra.mxu0 0
        %1039 = vmatprep.subr.bf16.mxu0 0
        %1040 = vmatpush1.bf16.msra.mxu0 0
        %1041 = vmatprep.subr.bf16.mxu0 0
        %1042 = vmatpush1.bf16.msra.mxu0 0
        %1043 = vmatprep.subr.bf16.mxu0 0
        %1044 = vmatpush1.bf16.msra.mxu0 0
        %1045 = vmatprep.mubr.bf16.mxu0 0
        %1046 = vmatmul.mubr.bf16.gmra.mrb[0].mxu0 %v794
        %v1047 = vpop.f32.mrb[0].mxu0
        %v1048 = vadd.f32 %v840, %v1047
        %v1049 = vpop.f32.mrb[0].mxu0
        %v1050 = vpop.f32.mrb[0].mxu0
        %v1051 = vpop.f32.mrb[0].mxu0
        %1052 = vdwg.mxu0
        %v1054 = vlaneseq
        %v1055 = vshrl.u32 %v1054, 7
        %v1056 = vsub.s32 0, %v1055
        %v1057 = vrot.slane %v784, %v1056
        %v1058 = vlaneseq
        %v1059 = vshrl.u32 %v1058, 7
        %v1060 = vsub.s32 1, %v1059
        %v1061 = vrot.slane %v784, %v1060
        %v1062 = vlaneseq
        %v1063 = vshrl.u32 %v1062, 7
        %v1064 = vsub.s32 2, %v1063
        %v1065 = vrot.slane %v784, %v1064
        %1069 = vmatprep.subr.mxu0 %v737
        %1070 = vmatpush1.msra.mxu0 %v736
        %1071 = vmatprep.subr.mxu0 %v740
        %1072 = vmatpush1.msra.mxu0 %v739
        %1073 = vmatprep.subr.mxu0 %v743
        %1074 = vmatpush1.msra.mxu0 %v742
        %1075 = vmatprep.subr.mxu0 %v746
        %1076 = vmatpush1.msra.mxu0 %v745
        %1077 = vmatprep.subr.mxu0 %v749
        %1078 = vmatpush1.msra.mxu0 %v748
        %1079 = vmatprep.subr.mxu0 %v752
        %1080 = vmatpush1.msra.mxu0 %v751
        %1081 = vmatprep.subr.mxu0 %v755
        %1082 = vmatpush1.msra.mxu0 %v754
        %1083 = vmatprep.subr.mxu0 %v758
        %1084 = vmatpush1.msra.mxu0 %v757
        %1085 = vmatprep.subr.mxu0 %v761
        %1086 = vmatpush1.msra.mxu0 %v760
        %1087 = vmatprep.subr.mxu0 %v764
        %1088 = vmatpush1.msra.mxu0 %v763
        %1089 = vmatprep.subr.mxu0 %v767
        %1090 = vmatpush1.msra.mxu0 %v766
        %1091 = vmatprep.subr.mxu0 %v770
        %1092 = vmatpush1.msra.mxu0 %v769
        %1093 = vmatprep.subr.mxu0 %v773
        %1094 = vmatpush1.msra.mxu0 %v772
        %1095 = vmatprep.subr.mxu0 %v776
        %1096 = vmatpush1.msra.mxu0 %v775
        %1097 = vmatprep.subr.mxu0 %v779
        %1098 = vmatpush1.msra.mxu0 %v778
        %1099 = vmatprep.subr.mxu0 %v782
        %1100 = vmatpush1.msra.mxu0 %v781
        %1101 = vmatprep.subr.mxu0 0.0
        %1102 = vmatpush1.msra.mxu0 0.0
        %1103 = vmatprep.subr.mxu0 0.0
        %1104 = vmatpush1.msra.mxu0 0.0
        %1105 = vmatprep.subr.mxu0 0.0
        %1106 = vmatpush1.msra.mxu0 0.0
        %1107 = vmatprep.subr.mxu0 0.0
        %1108 = vmatpush1.msra.mxu0 0.0
        %1109 = vmatprep.subr.mxu0 0.0
        %1110 = vmatpush1.msra.mxu0 0.0
        %1111 = vmatprep.subr.mxu0 0.0
        %1112 = vmatpush1.msra.mxu0 0.0
        %1113 = vmatprep.subr.mxu0 0.0
        %1114 = vmatpush1.msra.mxu0 0.0
        %1115 = vmatprep.subr.mxu0 0.0
        %1116 = vmatpush1.msra.mxu0 0.0
        %1117 = vmatprep.subr.mxu0 0.0
        %1118 = vmatpush1.msra.mxu0 0.0
        %1119 = vmatprep.subr.mxu0 0.0
        %1120 = vmatpush1.msra.mxu0 0.0
        %1121 = vmatprep.subr.mxu0 0.0
        %1122 = vmatpush1.msra.mxu0 0.0
        %1123 = vmatprep.subr.mxu0 0.0
        %1124 = vmatpush1.msra.mxu0 0.0
        %1125 = vmatprep.subr.mxu0 0.0
        %1126 = vmatpush1.msra.mxu0 0.0
        %1127 = vmatprep.subr.mxu0 0.0
        %1128 = vmatpush1.msra.mxu0 0.0
        %1129 = vmatprep.subr.mxu0 0.0
        %1130 = vmatpush1.msra.mxu0 0.0
        %1131 = vmatprep.subr.mxu0 0.0
        %1132 = vmatpush1.msra.mxu0 0.0
        %1133 = vmatprep.mubr.f32.mxu0 0.0
        %1134 = vmatmul.mubr.f32.gmra.mrb[0].mxu0 %v785
        %v1135 = vpop.f32.mrb[0].mxu0
        %v1136 = vadd.f32 %v1057, %v1135
        %v1137 = vpop.f32.mrb[0].mxu0
        %v1138 = vadd.f32 %v1061, %v1137
        %1139 = vdwg.mxu0
        %1140 = vmatprep.subr.mxu0 0.0
        %1141 = vmatpush1.msra.mxu0 %v738
        %1142 = vmatprep.subr.mxu0 0.0
        %1143 = vmatpush1.msra.mxu0 %v741
        %1144 = vmatprep.subr.mxu0 0.0
        %1145 = vmatpush1.msra.mxu0 %v744
        %1146 = vmatprep.subr.mxu0 0.0
        %1147 = vmatpush1.msra.mxu0 %v747
        %1148 = vmatprep.subr.mxu0 0.0
        %1149 = vmatpush1.msra.mxu0 %v750
        %1150 = vmatprep.subr.mxu0 0.0
        %1151 = vmatpush1.msra.mxu0 %v753
        %1152 = vmatprep.subr.mxu0 0.0
        %1153 = vmatpush1.msra.mxu0 %v756
        %1154 = vmatprep.subr.mxu0 0.0
        %1155 = vmatpush1.msra.mxu0 %v759
        %1156 = vmatprep.subr.mxu0 0.0
        %1157 = vmatpush1.msra.mxu0 %v762
        %1158 = vmatprep.subr.mxu0 0.0
        %1159 = vmatpush1.msra.mxu0 %v765
        %1160 = vmatprep.subr.mxu0 0.0
        %1161 = vmatpush1.msra.mxu0 %v768
        %1162 = vmatprep.subr.mxu0 0.0
        %1163 = vmatpush1.msra.mxu0 %v771
        %1164 = vmatprep.subr.mxu0 0.0
        %1165 = vmatpush1.msra.mxu0 %v774
        %1166 = vmatprep.subr.mxu0 0.0
        %1167 = vmatpush1.msra.mxu0 %v777
        %1168 = vmatprep.subr.mxu0 0.0
        %1169 = vmatpush1.msra.mxu0 %v780
        %1170 = vmatprep.subr.mxu0 0.0
        %1171 = vmatpush1.msra.mxu0 %v783
        %1172 = vmatprep.subr.mxu0 0.0
        %1173 = vmatpush1.msra.mxu0 0.0
        %1174 = vmatprep.subr.mxu0 0.0
        %1175 = vmatpush1.msra.mxu0 0.0
        %1176 = vmatprep.subr.mxu0 0.0
        %1177 = vmatpush1.msra.mxu0 0.0
        %1178 = vmatprep.subr.mxu0 0.0
        %1179 = vmatpush1.msra.mxu0 0.0
        %1180 = vmatprep.subr.mxu0 0.0
        %1181 = vmatpush1.msra.mxu0 0.0
        %1182 = vmatprep.subr.mxu0 0.0
        %1183 = vmatpush1.msra.mxu0 0.0
        %1184 = vmatprep.subr.mxu0 0.0
        %1185 = vmatpush1.msra.mxu0 0.0
        %1186 = vmatprep.subr.mxu0 0.0
        %1187 = vmatpush1.msra.mxu0 0.0
        %1188 = vmatprep.subr.mxu0 0.0
        %1189 = vmatpush1.msra.mxu0 0.0
        %1190 = vmatprep.subr.mxu0 0.0
        %1191 = vmatpush1.msra.mxu0 0.0
        %1192 = vmatprep.subr.mxu0 0.0
        %1193 = vmatpush1.msra.mxu0 0.0
        %1194 = vmatprep.subr.mxu0 0.0
        %1195 = vmatpush1.msra.mxu0 0.0
        %1196 = vmatprep.subr.mxu0 0.0
        %1197 = vmatpush1.msra.mxu0 0.0
        %1198 = vmatprep.subr.mxu0 0.0
        %1199 = vmatpush1.msra.mxu0 0.0
        %1200 = vmatprep.subr.mxu0 0.0
        %1201 = vmatpush1.msra.mxu0 0.0
        %1202 = vmatprep.subr.mxu0 0.0
        %1203 = vmatpush1.msra.mxu0 0.0
        %1204 = vmatprep.mubr.f32.mxu0 0.0
        %1205 = vmatmul.mubr.f32.gmra.mrb[0].mxu0 %v785
        %v1206 = vpop.f32.mrb[0].mxu0
        %v1207 = vadd.f32 %v1065, %v1206
        %v1208 = vpop.f32.mrb[0].mxu0
        %1209 = vdwg.mxu0
        %v1210 = vadd.f32 %v1007, %v1136
        %v1211 = vadd.f32 %v1009, %v1138
        %v1212 = vxor.u32 %v1210, 2147483648
        %v1213 = vxor.u32 %v1211, 2147483648
        %v1214 = vmul.f32 %v1212, 1.442695
        %v1215 = vpow.pop %v1214
        %v1216 = vmul.f32 %v1213, 1.442695
        %v1217 = vpow.pop %v1216
        %v1218 = vadd.f32 %v1215, 1.0
        %v1219 = vadd.f32 %v1217, 1.0
        %v1220 = vrcp.pop %v1218
        %v1221 = vmul.f32 1.0, %v1220
        %v1222 = vrcp.pop %v1219
        %v1223 = vmul.f32 1.0, %v1222
        %v1224 = vmul.f32 %v1221, %v1207
        %v1225 = vadd.f32 %v1048, %v1224
        %v1226 = vtanh.pop %v1225
        %v1227 = vsub.f32 1.0, %v1223
        %v1228 = vmul.f32 %v1227, %v1226
        %v1229 = vmul.f32 %v1223, %v785
        %v1230 = vadd.f32 %v1228, %v1229
        %1231 = vst [vmem:[%s9] sm:$0xff] %v1230
      $region68: #{gumbel_rnn_discriminator.1} parent=55 // pred_fallthru
        _
      // Predicated region
      $region73: #{gumbel_rnn_discriminator.1} parent=55 // pred_check
        %p1232 = pneg %p239
      $region74: #{gumbel_rnn_discriminator.1} parent=55 // pred_check_branch
        %1234 = sbr.rel (%p1232) target = $region76
      $region75: #{gumbel_rnn_discriminator.1} parent=55 // pred_region
        _
      $region76: #{gumbel_rnn_discriminator.1} parent=55 // pred_fallthru
        _
      // Predicated region
      $region77: #{gumbel_rnn_discriminator.1} parent=55 // pred_check
        %p1235 = pneg %p239
      $region78: #{gumbel_rnn_discriminator.1} parent=55 // pred_check_branch
        %1237 = sbr.rel (%p1235) target = $region80
      $region79: #{gumbel_rnn_discriminator.1} parent=55 // pred_region
        _
      $region80: #{gumbel_rnn_discriminator.1} parent=55 // pred_fallthru
        _
    $region56: #{gumbel_rnn_discriminator.1} parent=5 // pred_fallthru
      _
    %p1238 = scmp.le.s32.totalorder 2, %s15
    // Predicated region
    $region81: #{gumbel_rnn_discriminator.1} parent=5 // pred_check
      %p1239 = pneg %p1238
    $region82: #{gumbel_rnn_discriminator.1} parent=5 // pred_check_branch
      %1241 = sbr.rel (%p1239) target = $region84
    $region83: #{gumbel_rnn_discriminator.1} parent=5 // pred_region
      %s1242 = ssub.s32 %s15, 2
    $region84: #{gumbel_rnn_discriminator.1} parent=5 // pred_fallthru
      _
  $region6: #{gumbel_rnn_discriminator.1} parent=0 // loop_footer
    %s19 = sadd.s32 1, %s15
  $region7: #{gumbel_rnn_discriminator.1} parent=0 // loop_footer_branch
    %14 = sbr.rel target = $region3
  $region8: #{gumbel_rnn_discriminator.1} parent=0 // loop_exit
    _

</llo_original>
